<compile_context>
chip_gen: v6e
topology: v6e:2x2x1
jax: 0.10.0
libtpu: 0.0.40
codegen_flags: <defaults>
</compile_context>

<pallas_src>
import functools

import jax
import jax.numpy as jnp
import numpy as np
from jax.experimental import pallas as pl
from jax.experimental.pallas import tpu as pltpu


def _round_up(x, m):
    return ((x + m - 1) // m) * m


def _jtnn_encoder_kernel(depth, K, M, H,
                         fnode_ref, fmess_ref, gstack_ref, ngsum_ref,
                         Wzx_ref, Wzh_ref, bz_ref,
                         Wr_ref, Ur_ref, bUr_ref,
                         Whx_ref, Whh_ref, bh_ref,
                         Wox_ref, Woh_ref, bo_ref,
                         node_vecs_ref):
    fmess = fmess_ref[...]                                   # [M, H]  message inputs
    fnode = fnode_ref[...]                                   # [N, H]  node embeddings
    gstack = gstack_ref[...].astype(jnp.float32)             # [K*M, M] stacked gathers (col 0 = 0)
    ngsum = ngsum_ref[...].astype(jnp.float32)               # [N, M]  summed node gather (col 0 = 0)
    Ur = Ur_ref[...]                                         # [H, H]
    Wzh = Wzh_ref[...]                                       # [H, H]
    Whh = Whh_ref[...]                                       # [H, H]

    # ---- loop-invariant (x-dependent) terms, computed once --------------------
    r1 = jnp.dot(fmess, Wr_ref[...], preferred_element_type=jnp.float32) + bUr_ref[...]
    xWz = jnp.dot(fmess, Wzx_ref[...], preferred_element_type=jnp.float32) + bz_ref[...]
    xWh = jnp.dot(fmess, Whx_ref[...], preferred_element_type=jnp.float32) + bh_ref[...]

    def depth_step(_, h):
        # Batched neighbor gather: all K slots in one tall matmul.
        h_all = jnp.dot(gstack, h, preferred_element_type=jnp.float32)     # [K*M, H]
        ur_all = jnp.dot(h_all, Ur, preferred_element_type=jnp.float32)    # [K*M, H]
        sum_h = jnp.zeros((M, H), jnp.float32)
        sum_g = jnp.zeros((M, H), jnp.float32)
        for k in range(K):                      # short static loop, VPU-only work
            hk = h_all[k * M:(k + 1) * M]
            rk = jax.nn.sigmoid(r1 + ur_all[k * M:(k + 1) * M])
            sum_h = sum_h + hk
            sum_g = sum_g + rk * hk
        z = jax.nn.sigmoid(
            xWz + jnp.dot(sum_h, Wzh, preferred_element_type=jnp.float32))
        pre_h = jnp.tanh(
            xWh + jnp.dot(sum_g, Whh, preferred_element_type=jnp.float32))
        # padding mask is baked into gstack/ngsum (column 0 zeroed), so no h*mask.
        return (1.0 - z) * sum_h + z * pre_h

    h = jax.lax.fori_loop(0, depth, depth_step, jnp.zeros((M, H), jnp.float32))

    # Node-level neighbor-message sum: single collapsed gather matmul.
    mess_sum = jnp.dot(ngsum, h, preferred_element_type=jnp.float32)       # [N, H]

    # outputNN = ReLU(Linear([fnode, mess_sum]))   (concat as split matmul)
    node_out = (jnp.dot(fnode, Wox_ref[...], preferred_element_type=jnp.float32)
                + jnp.dot(mess_sum, Woh_ref[...], preferred_element_type=jnp.float32)
                + bo_ref[...])
    node_vecs_ref[...] = jnp.maximum(node_out, 0.0)


def jtnn_encoder_forward(params, fnode, fmess, node_graph, mess_graph, scope):
    """Pallas implementation of JTNNEncoder.forward (GRU rnn_type)."""
    emb = params["embedding"]                      # [V, H]
    H = emb.shape[1]
    Hp = _round_up(H, 128)                         # lane-dense hidden dim
    depth = params["depth"]
    M, K = mess_graph.shape
    N, _ = node_graph.shape

    # --- glue: embedding lookups + gather matrices (exact, mask baked in) -----
    fnode_emb = jnp.take(emb, fnode, axis=0)                       # [N, H]
    fmess_emb = jnp.take(fnode_emb, fmess, axis=0)                 # [M, H]

    mg = jax.nn.one_hot(mess_graph.T, M, dtype=jnp.float32)        # [K, M, M]
    mg = mg.at[:, :, 0].set(0.0)                                   # mask padding message 0
    gstack = mg.reshape(K * M, M).astype(jnp.bfloat16)             # bf16: 0/1 exact, half DMA

    ngsum = jax.nn.one_hot(node_graph, M, dtype=jnp.float32).sum(axis=1)   # [N, M]
    ngsum = ngsum.at[:, 0].set(0.0).astype(jnp.bfloat16)

    # --- pad hidden dim to 128 lanes (zero padding is exact, see header) ------
    pad_rows = lambda x: jnp.pad(x, ((0, 0), (0, Hp - H)))
    pad_w = lambda w: jnp.pad(w, ((0, Hp - H), (0, Hp - H)))
    fnode_p = pad_rows(fnode_emb)
    fmess_p = pad_rows(fmess_emb)
    Wz_x, Wz_h = pad_w(params["Wz"][:H]), pad_w(params["Wz"][H:])
    Wh_x, Wh_h = pad_w(params["Wh"][:H]), pad_w(params["Wh"][H:])
    Wo_x, Wo_h = pad_w(params["Wo"][:H]), pad_w(params["Wo"][H:])
    Wr_p, Ur_p = pad_w(params["Wr"]), pad_w(params["Ur"])
    bz_p, bUr_p = pad_rows(params["bz"]), pad_rows(params["bUr"])
    bh_p, bo_p = pad_rows(params["bh"]), pad_rows(params["bo"])

    kernel = functools.partial(_jtnn_encoder_kernel, depth, K, M, Hp)
    vmem = pl.BlockSpec(memory_space=pltpu.MemorySpace.VMEM)
    node_vecs_p = pl.pallas_call(
        kernel,
        out_shape=jax.ShapeDtypeStruct((N, Hp), jnp.float32),
        in_specs=[vmem] * 16,
        out_specs=vmem,
        compiler_params=pltpu.CompilerParams(
            vmem_limit_bytes=32 * 1024 * 1024),   # explicit budget (v7x-safe)
    )(fnode_p, fmess_p, gstack, ngsum,
      Wz_x, Wz_h, bz_p, Wr_p, Ur_p, bUr_p,
      Wh_x, Wh_h, bh_p, Wo_x, Wo_h, bo_p)

    node_vecs = node_vecs_p[:, :H]                                 # drop lane padding

    # --- scope-driven batching as ONE gather (no per-tree slice/pad/stack) ----
    max_len = max(le for _, le in scope)
    B = len(scope)
    idx = np.full((B, max_len), N, dtype=np.int32)                 # row N = zero pad row
    for b, (st, le) in enumerate(scope):
        idx[b, :le] = np.arange(st, st + le, dtype=np.int32)
    padded = jnp.concatenate([node_vecs, jnp.zeros((1, H), jnp.float32)], axis=0)
    tree_vecs = jnp.take(padded, jnp.asarray(idx), axis=0)         # [B, max_len, H]

    # The PyTorch module returns an untouched zero tensor as `messages`.
    messages = jnp.zeros((M, H), jnp.float32)
    return tree_vecs, messages


# ---------------------------------------------------------------------------
# Pure-JAX reference (mirrors the PyTorch code 1:1) for a sanity check.
# ---------------------------------------------------------------------------
def _reference_forward(params, fnode, fmess, node_graph, mess_graph, scope):
    emb = params["embedding"]
    H = emb.shape[1]
    M = mess_graph.shape[0]
    fnode_e = emb[fnode]
    fmess_e = fnode_e[fmess]
    mask = jnp.ones((M, 1), jnp.float32).at[0, 0].set(0.0)
    h = jnp.zeros((M, H), jnp.float32)
    for _ in range(params["depth"]):
        h_nei = h[mess_graph]                                   # [M, K, H]
        sum_h = h_nei.sum(axis=1)
        z = jax.nn.sigmoid(jnp.concatenate([fmess_e, sum_h], 1) @ params["Wz"] + params["bz"])
        r1 = (fmess_e @ params["Wr"])[:, None, :]
        r2 = h_nei @ params["Ur"] + params["bUr"]
        r = jax.nn.sigmoid(r1 + r2)
        sum_g = (r * h_nei).sum(axis=1)
        pre_h = jnp.tanh(jnp.concatenate([fmess_e, sum_g], 1) @ params["Wh"] + params["bh"])
        h = (1.0 - z) * sum_h + z * pre_h
        h = h * mask
    mess_nei = h[node_graph].sum(axis=1)
    node_vecs = jnp.maximum(
        jnp.concatenate([fnode_e, mess_nei], 1) @ params["Wo"] + params["bo"], 0.0)
    max_len = max(le for _, le in scope)
    tree_vecs = jnp.stack(
        [jnp.pad(node_vecs[st:st + le], ((0, max_len - le), (0, 0))) for st, le in scope], 0)
    return tree_vecs, jnp.zeros((M, H), jnp.float32)


if __name__ == "__main__":
    # Small synthetic problem consistent with the module's tensorize() outputs.
    V, H, DEPTH = 20, 32, 3          # vocab, hidden_size, depth
    N, M, K, KN = 8, 16, 4, 4        # nodes, messages(+pad), mess-nei, node-nei
    B = 2
    scope = [(0, 5), (5, 3)]         # two trees: 5 nodes + 3 nodes = N

    key = jax.random.PRNGKey(0)
    ks = jax.random.split(key, 16)
    params = {
        "depth": DEPTH,
        "embedding": jax.random.normal(ks[0], (V, H), jnp.float32) * 0.1,
        "Wz": jax.random.normal(ks[1], (2 * H, H), jnp.float32) * 0.1,
        "bz": jax.random.normal(ks[2], (1, H), jnp.float32) * 0.1,
        "Wr": jax.random.normal(ks[3], (H, H), jnp.float32) * 0.1,
        "Ur": jax.random.normal(ks[4], (H, H), jnp.float32) * 0.1,
        "bUr": jax.random.normal(ks[5], (1, H), jnp.float32) * 0.1,
        "Wh": jax.random.normal(ks[6], (2 * H, H), jnp.float32) * 0.1,
        "bh": jax.random.normal(ks[7], (1, H), jnp.float32) * 0.1,
        "Wo": jax.random.normal(ks[8], (2 * H, H), jnp.float32) * 0.1,
        "bo": jax.random.normal(ks[9], (1, H), jnp.float32) * 0.1,
    }

    fnode = jax.random.randint(ks[10], (N,), 0, V, jnp.int32)
    fmess = jax.random.randint(ks[11], (M,), 0, N, jnp.int32).at[0].set(0)
    node_graph = jax.random.randint(ks[12], (N, KN), 0, M, jnp.int32)
    mess_graph = jax.random.randint(ks[13], (M, K), 0, M, jnp.int32)

    tree_vecs, messages = jtnn_encoder_forward(
        params, fnode, fmess, node_graph, mess_graph, scope)
    jax.block_until_ready((tree_vecs, messages))

    ref_tree, ref_msg = _reference_forward(
        params, fnode, fmess, node_graph, mess_graph, scope)
    np.testing.assert_allclose(np.asarray(tree_vecs), np.asarray(ref_tree),
                               rtol=1e-3, atol=1e-3)
    np.testing.assert_allclose(np.asarray(messages), np.asarray(ref_msg),
                               rtol=1e-3, atol=1e-3)
    assert tree_vecs.shape == (B, max(le for _, le in scope), H)
    assert messages.shape == (M, H)
    print("KERNEL_OK")
</pallas_src>

<mosaic_0001>
module attributes {stable_mosaic.version = 11 : i64} {
  func.func @_jtnn_encoder_kernel(%arg0: memref<8x128xf32, #tpu.memory_space<vmem>>, %arg1: memref<16x128xf32, #tpu.memory_space<vmem>>, %arg2: memref<64x16xbf16, #tpu.memory_space<vmem>>, %arg3: memref<8x16xbf16, #tpu.memory_space<vmem>>, %arg4: memref<128x128xf32, #tpu.memory_space<vmem>>, %arg5: memref<128x128xf32, #tpu.memory_space<vmem>>, %arg6: memref<1x128xf32, #tpu.memory_space<vmem>>, %arg7: memref<128x128xf32, #tpu.memory_space<vmem>>, %arg8: memref<128x128xf32, #tpu.memory_space<vmem>>, %arg9: memref<1x128xf32, #tpu.memory_space<vmem>>, %arg10: memref<128x128xf32, #tpu.memory_space<vmem>>, %arg11: memref<128x128xf32, #tpu.memory_space<vmem>>, %arg12: memref<1x128xf32, #tpu.memory_space<vmem>>, %arg13: memref<128x128xf32, #tpu.memory_space<vmem>>, %arg14: memref<128x128xf32, #tpu.memory_space<vmem>>, %arg15: memref<1x128xf32, #tpu.memory_space<vmem>>, %arg16: memref<8x128xf32, #tpu.memory_space<vmem>>) attributes {dimension_semantics = [], scalar_prefetch = 0 : i64, scratch_operands = 0 : i64, tpu.core_type = #tpu.core_type<tc>} {
    %c0 = arith.constant 0 : index
    %c0_0 = arith.constant 0 : index
    %0 = vector.load %arg1[%c0, %c0_0] : memref<16x128xf32, #tpu.memory_space<vmem>>, vector<16x128xf32>
    %c0_1 = arith.constant 0 : index
    %c0_2 = arith.constant 0 : index
    %1 = vector.load %arg0[%c0_1, %c0_2] : memref<8x128xf32, #tpu.memory_space<vmem>>, vector<8x128xf32>
    %c0_3 = arith.constant 0 : index
    %c0_4 = arith.constant 0 : index
    %2 = vector.load %arg2[%c0_3, %c0_4] : memref<64x16xbf16, #tpu.memory_space<vmem>>, vector<64x16xbf16>
    %3 = arith.extf %2 : vector<64x16xbf16> to vector<64x16xf32>
    %c0_5 = arith.constant 0 : index
    %c0_6 = arith.constant 0 : index
    %4 = vector.load %arg3[%c0_5, %c0_6] : memref<8x16xbf16, #tpu.memory_space<vmem>>, vector<8x16xbf16>
    %5 = arith.extf %4 : vector<8x16xbf16> to vector<8x16xf32>
    %c0_7 = arith.constant 0 : index
    %c0_8 = arith.constant 0 : index
    %6 = vector.load %arg8[%c0_7, %c0_8] : memref<128x128xf32, #tpu.memory_space<vmem>>, vector<128x128xf32>
    %c0_9 = arith.constant 0 : index
    %c0_10 = arith.constant 0 : index
    %7 = vector.load %arg5[%c0_9, %c0_10] : memref<128x128xf32, #tpu.memory_space<vmem>>, vector<128x128xf32>
    %c0_11 = arith.constant 0 : index
    %c0_12 = arith.constant 0 : index
    %8 = vector.load %arg11[%c0_11, %c0_12] : memref<128x128xf32, #tpu.memory_space<vmem>>, vector<128x128xf32>
    %c0_13 = arith.constant 0 : index
    %c0_14 = arith.constant 0 : index
    %9 = vector.load %arg7[%c0_13, %c0_14] : memref<128x128xf32, #tpu.memory_space<vmem>>, vector<128x128xf32>
    %cst = arith.constant dense<0.000000e+00> : vector<16x128xf32>
    %10 = tpu.matmul %0, %9, %cst {dimension_numbers = #tpu.dot_dimension_numbers<[1], [0], [0], [1], [0, 0, 1, 1], [], []>} : vector<16x128xf32>, vector<128x128xf32>, vector<16x128xf32> -> vector<16x128xf32>
    %c0_15 = arith.constant 0 : index
    %c0_16 = arith.constant 0 : index
    %11 = vector.load %arg9[%c0_15, %c0_16] : memref<1x128xf32, #tpu.memory_space<vmem>>, vector<1x128xf32>
    %12 = vector.broadcast %11 : vector<1x128xf32> to vector<16x128xf32>
    %13 = arith.addf %10, %12 : vector<16x128xf32>
    %c0_17 = arith.constant 0 : index
    %c0_18 = arith.constant 0 : index
    %14 = vector.load %arg4[%c0_17, %c0_18] : memref<128x128xf32, #tpu.memory_space<vmem>>, vector<128x128xf32>
    %cst_19 = arith.constant dense<0.000000e+00> : vector<16x128xf32>
    %15 = tpu.matmul %0, %14, %cst_19 {dimension_numbers = #tpu.dot_dimension_numbers<[1], [0], [0], [1], [0, 0, 1, 1], [], []>} : vector<16x128xf32>, vector<128x128xf32>, vector<16x128xf32> -> vector<16x128xf32>
    %c0_20 = arith.constant 0 : index
    %c0_21 = arith.constant 0 : index
    %16 = vector.load %arg6[%c0_20, %c0_21] : memref<1x128xf32, #tpu.memory_space<vmem>>, vector<1x128xf32>
    %17 = vector.broadcast %16 : vector<1x128xf32> to vector<16x128xf32>
    %18 = arith.addf %15, %17 : vector<16x128xf32>
    %c0_22 = arith.constant 0 : index
    %c0_23 = arith.constant 0 : index
    %19 = vector.load %arg10[%c0_22, %c0_23] : memref<128x128xf32, #tpu.memory_space<vmem>>, vector<128x128xf32>
    %cst_24 = arith.constant dense<0.000000e+00> : vector<16x128xf32>
    %20 = tpu.matmul %0, %19, %cst_24 {dimension_numbers = #tpu.dot_dimension_numbers<[1], [0], [0], [1], [0, 0, 1, 1], [], []>} : vector<16x128xf32>, vector<128x128xf32>, vector<16x128xf32> -> vector<16x128xf32>
    %c0_25 = arith.constant 0 : index
    %c0_26 = arith.constant 0 : index
    %21 = vector.load %arg12[%c0_25, %c0_26] : memref<1x128xf32, #tpu.memory_space<vmem>>, vector<1x128xf32>
    %22 = vector.broadcast %21 : vector<1x128xf32> to vector<16x128xf32>
    %23 = arith.addf %20, %22 : vector<16x128xf32>
    %cst_27 = arith.constant 0.000000e+00 : f32
    %24 = vector.broadcast %cst_27 : f32 to vector<16x128xf32>
    %c0_i32 = arith.constant 0 : i32
    %c3_i32 = arith.constant 3 : i32
    %25 = arith.addi %c0_i32, %c3_i32 : i32
    %c1_i32 = arith.constant 1 : i32
    %26 = scf.for %arg17 = %c0_i32 to %25 step %c1_i32 iter_args(%arg18 = %24) -> (vector<16x128xf32>)  : i32 {
      %cst_40 = arith.constant dense<0.000000e+00> : vector<64x128xf32>
      %39 = tpu.matmul %3, %arg18, %cst_40 {dimension_numbers = #tpu.dot_dimension_numbers<[1], [0], [0], [1], [0, 0, 1, 1], [], []>} : vector<64x16xf32>, vector<16x128xf32>, vector<64x128xf32> -> vector<64x128xf32>
      %cst_41 = arith.constant dense<0.000000e+00> : vector<64x128xf32>
      %40 = tpu.matmul %39, %6, %cst_41 {dimension_numbers = #tpu.dot_dimension_numbers<[1], [0], [0], [1], [0, 0, 1, 1], [], []>} : vector<64x128xf32>, vector<128x128xf32>, vector<64x128xf32> -> vector<64x128xf32>
      %cst_42 = arith.constant 0.000000e+00 : f32
      %41 = vector.broadcast %cst_42 : f32 to vector<16x128xf32>
      %cst_43 = arith.constant 0.000000e+00 : f32
      %42 = vector.broadcast %cst_43 : f32 to vector<16x128xf32>
      %43 = vector.extract_strided_slice %39 {offsets = [0, 0], sizes = [16, 128], strides = [1, 1]} : vector<64x128xf32> to vector<16x128xf32>
      %44 = vector.extract_strided_slice %40 {offsets = [0, 0], sizes = [16, 128], strides = [1, 1]} : vector<64x128xf32> to vector<16x128xf32>
      %45 = arith.addf %13, %44 : vector<16x128xf32>
      %46 = arith.negf %45 : vector<16x128xf32>
      %47 = math.exp %46 : vector<16x128xf32>
      %cst_44 = arith.constant 1.000000e+00 : f32
      %48 = vector.broadcast %cst_44 : f32 to vector<16x128xf32>
      %49 = arith.addf %48, %47 : vector<16x128xf32>
      %50 = arith.divf %48, %49 : vector<16x128xf32>
      %51 = arith.addf %41, %43 : vector<16x128xf32>
      %52 = arith.mulf %50, %43 : vector<16x128xf32>
      %53 = arith.addf %42, %52 : vector<16x128xf32>
      %54 = vector.extract_strided_slice %39 {offsets = [16, 0], sizes = [16, 128], strides = [1, 1]} : vector<64x128xf32> to vector<16x128xf32>
      %55 = vector.extract_strided_slice %40 {offsets = [16, 0], sizes = [16, 128], strides = [1, 1]} : vector<64x128xf32> to vector<16x128xf32>
      %56 = arith.addf %13, %55 : vector<16x128xf32>
      %57 = arith.negf %56 : vector<16x128xf32>
      %58 = math.exp %57 : vector<16x128xf32>
      %cst_45 = arith.constant 1.000000e+00 : f32
      %59 = vector.broadcast %cst_45 : f32 to vector<16x128xf32>
      %60 = arith.addf %59, %58 : vector<16x128xf32>
      %61 = arith.divf %59, %60 : vector<16x128xf32>
      %62 = arith.addf %51, %54 : vector<16x128xf32>
      %63 = arith.mulf %61, %54 : vector<16x128xf32>
      %64 = arith.addf %53, %63 : vector<16x128xf32>
      %65 = vector.extract_strided_slice %39 {offsets = [32, 0], sizes = [16, 128], strides = [1, 1]} : vector<64x128xf32> to vector<16x128xf32>
      %66 = vector.extract_strided_slice %40 {offsets = [32, 0], sizes = [16, 128], strides = [1, 1]} : vector<64x128xf32> to vector<16x128xf32>
      %67 = arith.addf %13, %66 : vector<16x128xf32>
      %68 = arith.negf %67 : vector<16x128xf32>
      %69 = math.exp %68 : vector<16x128xf32>
      %cst_46 = arith.constant 1.000000e+00 : f32
      %70 = vector.broadcast %cst_46 : f32 to vector<16x128xf32>
      %71 = arith.addf %70, %69 : vector<16x128xf32>
      %72 = arith.divf %70, %71 : vector<16x128xf32>
      %73 = arith.addf %62, %65 : vector<16x128xf32>
      %74 = arith.mulf %72, %65 : vector<16x128xf32>
      %75 = arith.addf %64, %74 : vector<16x128xf32>
      %76 = vector.extract_strided_slice %39 {offsets = [48, 0], sizes = [16, 128], strides = [1, 1]} : vector<64x128xf32> to vector<16x128xf32>
      %77 = vector.extract_strided_slice %40 {offsets = [48, 0], sizes = [16, 128], strides = [1, 1]} : vector<64x128xf32> to vector<16x128xf32>
      %78 = arith.addf %13, %77 : vector<16x128xf32>
      %79 = arith.negf %78 : vector<16x128xf32>
      %80 = math.exp %79 : vector<16x128xf32>
      %cst_47 = arith.constant 1.000000e+00 : f32
      %81 = vector.broadcast %cst_47 : f32 to vector<16x128xf32>
      %82 = arith.addf %81, %80 : vector<16x128xf32>
      %83 = arith.divf %81, %82 : vector<16x128xf32>
      %84 = arith.addf %73, %76 : vector<16x128xf32>
      %85 = arith.mulf %83, %76 : vector<16x128xf32>
      %86 = arith.addf %75, %85 : vector<16x128xf32>
      %cst_48 = arith.constant dense<0.000000e+00> : vector<16x128xf32>
      %87 = tpu.matmul %84, %7, %cst_48 {dimension_numbers = #tpu.dot_dimension_numbers<[1], [0], [0], [1], [0, 0, 1, 1], [], []>} : vector<16x128xf32>, vector<128x128xf32>, vector<16x128xf32> -> vector<16x128xf32>
      %88 = arith.addf %18, %87 : vector<16x128xf32>
      %89 = arith.negf %88 : vector<16x128xf32>
      %90 = math.exp %89 : vector<16x128xf32>
      %cst_49 = arith.constant 1.000000e+00 : f32
      %91 = vector.broadcast %cst_49 : f32 to vector<16x128xf32>
      %92 = arith.addf %91, %90 : vector<16x128xf32>
      %93 = arith.divf %91, %92 : vector<16x128xf32>
      %cst_50 = arith.constant dense<0.000000e+00> : vector<16x128xf32>
      %94 = tpu.matmul %86, %8, %cst_50 {dimension_numbers = #tpu.dot_dimension_numbers<[1], [0], [0], [1], [0, 0, 1, 1], [], []>} : vector<16x128xf32>, vector<128x128xf32>, vector<16x128xf32> -> vector<16x128xf32>
      %95 = arith.addf %23, %94 : vector<16x128xf32>
      %96 = math.tanh %95 : vector<16x128xf32>
      %cst_51 = arith.constant 1.000000e+00 : f32
      %97 = vector.broadcast %cst_51 : f32 to vector<16x128xf32>
      %98 = arith.subf %97, %93 : vector<16x128xf32>
      %99 = arith.mulf %98, %84 : vector<16x128xf32>
      %100 = arith.mulf %93, %96 : vector<16x128xf32>
      %101 = arith.addf %99, %100 : vector<16x128xf32>
      scf.yield %101 : vector<16x128xf32>
    }
    %cst_28 = arith.constant dense<0.000000e+00> : vector<8x128xf32>
    %27 = tpu.matmul %5, %26, %cst_28 {dimension_numbers = #tpu.dot_dimension_numbers<[1], [0], [0], [1], [0, 0, 1, 1], [], []>} : vector<8x16xf32>, vector<16x128xf32>, vector<8x128xf32> -> vector<8x128xf32>
    %c0_29 = arith.constant 0 : index
    %c0_30 = arith.constant 0 : index
    %28 = vector.load %arg13[%c0_29, %c0_30] : memref<128x128xf32, #tpu.memory_space<vmem>>, vector<128x128xf32>
    %cst_31 = arith.constant dense<0.000000e+00> : vector<8x128xf32>
    %29 = tpu.matmul %1, %28, %cst_31 {dimension_numbers = #tpu.dot_dimension_numbers<[1], [0], [0], [1], [0, 0, 1, 1], [], []>} : vector<8x128xf32>, vector<128x128xf32>, vector<8x128xf32> -> vector<8x128xf32>
    %c0_32 = arith.constant 0 : index
    %c0_33 = arith.constant 0 : index
    %30 = vector.load %arg14[%c0_32, %c0_33] : memref<128x128xf32, #tpu.memory_space<vmem>>, vector<128x128xf32>
    %cst_34 = arith.constant dense<0.000000e+00> : vector<8x128xf32>
    %31 = tpu.matmul %27, %30, %cst_34 {dimension_numbers = #tpu.dot_dimension_numbers<[1], [0], [0], [1], [0, 0, 1, 1], [], []>} : vector<8x128xf32>, vector<128x128xf32>, vector<8x128xf32> -> vector<8x128xf32>
    %32 = arith.addf %29, %31 : vector<8x128xf32>
    %c0_35 = arith.constant 0 : index
    %c0_36 = arith.constant 0 : index
    %33 = vector.load %arg15[%c0_35, %c0_36] : memref<1x128xf32, #tpu.memory_space<vmem>>, vector<1x128xf32>
    %34 = vector.broadcast %33 : vector<1x128xf32> to vector<8x128xf32>
    %35 = arith.addf %32, %34 : vector<8x128xf32>
    %cst_37 = arith.constant 0.000000e+00 : f32
    %36 = vector.broadcast %cst_37 : f32 to vector<8x128xf32>
    %37 = arith.maximumf %35, %36 : vector<8x128xf32>
    %c0_38 = arith.constant 0 : index
    %c0_39 = arith.constant 0 : index
    %38 = vector.load %arg16[%c0_38, %c0_39] : memref<8x128xf32, #tpu.memory_space<vmem>>, vector<8x128xf32>
    tpu.vector_store %arg16[%c0_38, %c0_39], %37 {strides = array<i32>} : memref<8x128xf32, #tpu.memory_space<vmem>>, vector<8x128xf32>,
    return
  }
}

</mosaic_0001>

<llo_original>
// kernel: tpu_custom_call.1
$region0: #{tpu_custom_call.1}
  #allocation0 [shape = 'u32[]', space=smem, size = 0x4, offset = 0x4, fixed_abs, tag = 'smem constant byte address 0x4 - core index']
  #allocation1 [shape = 'u32[144,128]{1,0:T(1,128)}', space=vmem, size = 0x12000, scoped, tag = 'internal scratch']
  %s0 = inlined_call_operand.vmem [shape: f32[8,128], index: 0, kind: input, shape index: {}]
  %s1 = inlined_call_operand.vmem [shape: f32[16,128], index: 1, kind: input, shape index: {}]
  %s2 = inlined_call_operand.vmem [shape: bf16[64,16], index: 2, kind: input, shape index: {}]
  %s3 = inlined_call_operand.vmem [shape: bf16[8,16], index: 3, kind: input, shape index: {}]
  %s4 = inlined_call_operand.hbm [shape: f32[128,128], index: 4, kind: input, shape index: {}]
  %s5 = inlined_call_operand.hbm [shape: f32[128,128], index: 5, kind: input, shape index: {}]
  %s6 = inlined_call_operand.vmem [shape: f32[1,128], index: 6, kind: input, shape index: {}]
  %s7 = inlined_call_operand.hbm [shape: f32[128,128], index: 7, kind: input, shape index: {}]
  %s8 = inlined_call_operand.hbm [shape: f32[128,128], index: 8, kind: input, shape index: {}]
  %s9 = inlined_call_operand.vmem [shape: f32[1,128], index: 9, kind: input, shape index: {}]
  %s10 = inlined_call_operand.hbm [shape: f32[128,128], index: 10, kind: input, shape index: {}]
  %s11 = inlined_call_operand.hbm [shape: f32[128,128], index: 11, kind: input, shape index: {}]
  %s12 = inlined_call_operand.vmem [shape: f32[1,128], index: 12, kind: input, shape index: {}]
  %s13 = inlined_call_operand.hbm [shape: f32[128,128], index: 13, kind: input, shape index: {}]
  %s14 = inlined_call_operand.hbm [shape: f32[128,128], index: 14, kind: input, shape index: {}]
  %s15 = inlined_call_operand.vmem [shape: f32[1,128], index: 15, kind: input, shape index: {}]
  %s16 = inlined_call_operand.hbm [shape: f32[8,128], index: 16, kind: output, shape index: {}]
  %s17 = sld [smem:[#allocation0]]
  $region113: #{tpu_custom_call.1} parent=0
    _
  %s19 = ssub.s32 1, %s17
  %s20 = scalar_select 0, %s19, %s17
  $region1: #{tpu_custom_call.1} parent=0
    #allocation2 [shape = 'u8[65536]{0}', space=vmem, size = 0x10000, scoped, tag = 'input window, operand 4, single buffered']
    #allocation3 [shape = 's32[1]{0}', space=sflag, size = 0x4, scoped, tag = 'scoped memory for tpu_custom_call.1']
    #allocation4 [shape = 's32[1]{0}', space=sflag, size = 0x4, scoped, tag = 'scoped memory for tpu_custom_call.1']
    #allocation5 [shape = 'u8[65536]{0}', space=vmem, size = 0x10000, scoped, tag = 'input window, operand 5, single buffered']
    #allocation6 [shape = 's32[1]{0}', space=sflag, size = 0x4, scoped, tag = 'scoped memory for tpu_custom_call.1']
    #allocation7 [shape = 'u8[65536]{0}', space=vmem, size = 0x10000, scoped, tag = 'input window, operand 7, single buffered']
    #allocation8 [shape = 'u8[65536]{0}', space=vmem, size = 0x10000, scoped, tag = 'input window, operand 8, single buffered']
    #allocation9 [shape = 's32[1]{0}', space=sflag, size = 0x4, scoped, tag = 'scoped memory for tpu_custom_call.1']
    #allocation10 [shape = 'u8[65536]{0}', space=vmem, size = 0x10000, scoped, tag = 'input window, operand 10, single buffered']
    #allocation11 [shape = 'u8[65536]{0}', space=vmem, size = 0x10000, scoped, tag = 'input window, operand 11, single buffered']
    #allocation12 [shape = 's32[1]{0}', space=sflag, size = 0x4, scoped, tag = 'scoped memory for tpu_custom_call.1']
    #allocation13 [shape = 'u8[65536]{0}', space=vmem, size = 0x10000, scoped, tag = 'input window, operand 13, single buffered']
    #allocation14 [shape = 'u8[65536]{0}', space=vmem, size = 0x10000, scoped, tag = 'input window, operand 14, single buffered']
    #allocation15 [shape = 's32[1]{0}', space=sflag, size = 0x4, scoped, tag = 'scoped memory for tpu_custom_call.1']
    #allocation16 [shape = 'u8[4096]{0}', space=vmem, size = 0x1000, scoped, tag = 'output window, operand 0, single buffered']
    %21 = vsyncpa [#allocation3], 0
    %22 = vsyncpa [#allocation6], 0
    %23 = vsyncpa [#allocation9], 0
    %24 = vsyncpa [#allocation12], 0
    %25 = vsyncpa [#allocation15], 0
    %26 = vsyncpa [#allocation4], 0
    // Predicated region
    $region2: #{tpu_custom_call.1} parent=1 // pred_check
      _
    $region3: #{tpu_custom_call.1} parent=1 // pred_check_branch
      %28 = sbr.rel (0) target = $region5
    $region4: #{tpu_custom_call.1} parent=1 // pred_region
      _
    $region5: #{tpu_custom_call.1} parent=1 // pred_fallthru
      _
    // Predicated region
    $region6: #{tpu_custom_call.1} parent=1 // pred_check
      _
    $region7: #{tpu_custom_call.1} parent=1 // pred_check_branch
      %30 = sbr.rel (0) target = $region9
    $region8: #{tpu_custom_call.1} parent=1 // pred_region
      _
    $region9: #{tpu_custom_call.1} parent=1 // pred_fallthru
      _
    // Predicated region
    $region10: #{tpu_custom_call.1} parent=1 // pred_check
      _
    $region11: #{tpu_custom_call.1} parent=1 // pred_check_branch
      %32 = sbr.rel (0) target = $region13
    $region12: #{tpu_custom_call.1} parent=1 // pred_region
      _
    $region13: #{tpu_custom_call.1} parent=1 // pred_fallthru
      _
    // Predicated region
    $region14: #{tpu_custom_call.1} parent=1 // pred_check
      _
    $region15: #{tpu_custom_call.1} parent=1 // pred_check_branch
      %34 = sbr.rel (0) target = $region17
    $region16: #{tpu_custom_call.1} parent=1 // pred_region
      _
    $region17: #{tpu_custom_call.1} parent=1 // pred_fallthru
      _
    // Predicated region
    $region18: #{tpu_custom_call.1} parent=1 // pred_check
      _
    $region19: #{tpu_custom_call.1} parent=1 // pred_check_branch
      %36 = sbr.rel (0) target = $region21
    $region20: #{tpu_custom_call.1} parent=1 // pred_region
      %s38 = ssub.s32 2048, 2048
      %39 = vsyncadd [#allocation3], %s38
      %s40 = sshll.u32 [#allocation2], 4
      %s41 = int_to_ptr.vmem [resolvable:$true] %s40
      %46 = dma.hbm_to_vmem [thread:$0]  %s4, 2048, %s41, [#allocation3], 128, 128, 8
    $region21: #{tpu_custom_call.1} parent=1 // pred_fallthru
      _
    // Predicated region
    $region22: #{tpu_custom_call.1} parent=1 // pred_check
      _
    $region23: #{tpu_custom_call.1} parent=1 // pred_check_branch
      %48 = sbr.rel (0) target = $region25
    $region24: #{tpu_custom_call.1} parent=1 // pred_region
      %s50 = ssub.s32 2048, 2048
      %51 = vsyncadd [#allocation6], %s50
      %s52 = sshll.u32 [#allocation5], 4
      %s53 = int_to_ptr.vmem [resolvable:$true] %s52
      %58 = dma.hbm_to_vmem [thread:$0]  %s5, 2048, %s53, [#allocation6], 128, 128, 8
    $region25: #{tpu_custom_call.1} parent=1 // pred_fallthru
      _
    // Predicated region
    $region26: #{tpu_custom_call.1} parent=1 // pred_check
      _
    $region27: #{tpu_custom_call.1} parent=1 // pred_check_branch
      %60 = sbr.rel (0) target = $region29
    $region28: #{tpu_custom_call.1} parent=1 // pred_region
      _
    $region29: #{tpu_custom_call.1} parent=1 // pred_fallthru
      _
    // Predicated region
    $region30: #{tpu_custom_call.1} parent=1 // pred_check
      _
    $region31: #{tpu_custom_call.1} parent=1 // pred_check_branch
      %62 = sbr.rel (0) target = $region33
    $region32: #{tpu_custom_call.1} parent=1 // pred_region
      %s64 = ssub.s32 2048, 2048
      %65 = vsyncadd [#allocation6], %s64
      %s66 = sshll.u32 [#allocation7], 4
      %s67 = int_to_ptr.vmem [resolvable:$true] %s66
      %72 = dma.hbm_to_vmem [thread:$0]  %s7, 2048, %s67, [#allocation6], 128, 128, 8
    $region33: #{tpu_custom_call.1} parent=1 // pred_fallthru
      _
    // Predicated region
    $region34: #{tpu_custom_call.1} parent=1 // pred_check
      _
    $region35: #{tpu_custom_call.1} parent=1 // pred_check_branch
      %74 = sbr.rel (0) target = $region37
    $region36: #{tpu_custom_call.1} parent=1 // pred_region
      %s76 = ssub.s32 2048, 2048
      %77 = vsyncadd [#allocation9], %s76
      %s78 = sshll.u32 [#allocation8], 4
      %s79 = int_to_ptr.vmem [resolvable:$true] %s78
      %84 = dma.hbm_to_vmem [thread:$0]  %s8, 2048, %s79, [#allocation9], 128, 128, 8
    $region37: #{tpu_custom_call.1} parent=1 // pred_fallthru
      _
    // Predicated region
    $region38: #{tpu_custom_call.1} parent=1 // pred_check
      _
    $region39: #{tpu_custom_call.1} parent=1 // pred_check_branch
      %86 = sbr.rel (0) target = $region41
    $region40: #{tpu_custom_call.1} parent=1 // pred_region
      _
    $region41: #{tpu_custom_call.1} parent=1 // pred_fallthru
      _
    // Predicated region
    $region42: #{tpu_custom_call.1} parent=1 // pred_check
      _
    $region43: #{tpu_custom_call.1} parent=1 // pred_check_branch
      %88 = sbr.rel (0) target = $region45
    $region44: #{tpu_custom_call.1} parent=1 // pred_region
      %s90 = ssub.s32 2048, 2048
      %91 = vsyncadd [#allocation9], %s90
      %s92 = sshll.u32 [#allocation10], 4
      %s93 = int_to_ptr.vmem [resolvable:$true] %s92
      %98 = dma.hbm_to_vmem [thread:$0]  %s10, 2048, %s93, [#allocation9], 128, 128, 8
    $region45: #{tpu_custom_call.1} parent=1 // pred_fallthru
      _
    // Predicated region
    $region46: #{tpu_custom_call.1} parent=1 // pred_check
      _
    $region47: #{tpu_custom_call.1} parent=1 // pred_check_branch
      %100 = sbr.rel (0) target = $region49
    $region48: #{tpu_custom_call.1} parent=1 // pred_region
      %s102 = ssub.s32 2048, 2048
      %103 = vsyncadd [#allocation12], %s102
      %s104 = sshll.u32 [#allocation11], 4
      %s105 = int_to_ptr.vmem [resolvable:$true] %s104
      %110 = dma.hbm_to_vmem [thread:$0]  %s11, 2048, %s105, [#allocation12], 128, 128, 8
    $region49: #{tpu_custom_call.1} parent=1 // pred_fallthru
      _
    // Predicated region
    $region50: #{tpu_custom_call.1} parent=1 // pred_check
      _
    $region51: #{tpu_custom_call.1} parent=1 // pred_check_branch
      %112 = sbr.rel (0) target = $region53
    $region52: #{tpu_custom_call.1} parent=1 // pred_region
      _
    $region53: #{tpu_custom_call.1} parent=1 // pred_fallthru
      _
    // Predicated region
    $region54: #{tpu_custom_call.1} parent=1 // pred_check
      _
    $region55: #{tpu_custom_call.1} parent=1 // pred_check_branch
      %114 = sbr.rel (0) target = $region57
    $region56: #{tpu_custom_call.1} parent=1 // pred_region
      %s116 = ssub.s32 2048, 2048
      %117 = vsyncadd [#allocation12], %s116
      %s118 = sshll.u32 [#allocation13], 4
      %s119 = int_to_ptr.vmem [resolvable:$true] %s118
      %124 = dma.hbm_to_vmem [thread:$0]  %s13, 2048, %s119, [#allocation12], 128, 128, 8
    $region57: #{tpu_custom_call.1} parent=1 // pred_fallthru
      _
    // Predicated region
    $region58: #{tpu_custom_call.1} parent=1 // pred_check
      _
    $region59: #{tpu_custom_call.1} parent=1 // pred_check_branch
      %126 = sbr.rel (0) target = $region61
    $region60: #{tpu_custom_call.1} parent=1 // pred_region
      %s128 = ssub.s32 2048, 2048
      %129 = vsyncadd [#allocation15], %s128
      %s130 = sshll.u32 [#allocation14], 4
      %s131 = int_to_ptr.vmem [resolvable:$true] %s130
      %136 = dma.hbm_to_vmem [thread:$0]  %s14, 2048, %s131, [#allocation15], 128, 128, 8
    $region61: #{tpu_custom_call.1} parent=1 // pred_fallthru
      _
    // Predicated region
    $region62: #{tpu_custom_call.1} parent=1 // pred_check
      _
    $region63: #{tpu_custom_call.1} parent=1 // pred_check_branch
      %138 = sbr.rel (0) target = $region65
    $region64: #{tpu_custom_call.1} parent=1 // pred_region
      _
    $region65: #{tpu_custom_call.1} parent=1 // pred_fallthru
      _
    // Predicated region
    $region66: #{tpu_custom_call.1} parent=1 // pred_check
      _
    $region67: #{tpu_custom_call.1} parent=1 // pred_check_branch
      %140 = sbr.rel (0) target = $region69
    $region68: #{tpu_custom_call.1} parent=1 // pred_region
      %141 = dma.done [#allocation3], 2048
    $region69: #{tpu_custom_call.1} parent=1 // pred_fallthru
      _
    // Predicated region
    $region70: #{tpu_custom_call.1} parent=1 // pred_check
      _
    $region71: #{tpu_custom_call.1} parent=1 // pred_check_branch
      %143 = sbr.rel (0) target = $region73
    $region72: #{tpu_custom_call.1} parent=1 // pred_region
      %144 = dma.done [#allocation6], 2048
    $region73: #{tpu_custom_call.1} parent=1 // pred_fallthru
      _
    // Predicated region
    $region74: #{tpu_custom_call.1} parent=1 // pred_check
      _
    $region75: #{tpu_custom_call.1} parent=1 // pred_check_branch
      %146 = sbr.rel (0) target = $region77
    $region76: #{tpu_custom_call.1} parent=1 // pred_region
      %147 = dma.done [#allocation6], 2048
    $region77: #{tpu_custom_call.1} parent=1 // pred_fallthru
      _
    // Predicated region
    $region78: #{tpu_custom_call.1} parent=1 // pred_check
      _
    $region79: #{tpu_custom_call.1} parent=1 // pred_check_branch
      %149 = sbr.rel (0) target = $region81
    $region80: #{tpu_custom_call.1} parent=1 // pred_region
      %150 = dma.done [#allocation9], 2048
    $region81: #{tpu_custom_call.1} parent=1 // pred_fallthru
      _
    // Predicated region
    $region82: #{tpu_custom_call.1} parent=1 // pred_check
      _
    $region83: #{tpu_custom_call.1} parent=1 // pred_check_branch
      %152 = sbr.rel (0) target = $region85
    $region84: #{tpu_custom_call.1} parent=1 // pred_region
      %153 = dma.done [#allocation9], 2048
    $region85: #{tpu_custom_call.1} parent=1 // pred_fallthru
      _
    // Predicated region
    $region86: #{tpu_custom_call.1} parent=1 // pred_check
      _
    $region87: #{tpu_custom_call.1} parent=1 // pred_check_branch
      %155 = sbr.rel (0) target = $region89
    $region88: #{tpu_custom_call.1} parent=1 // pred_region
      %156 = dma.done [#allocation12], 2048
    $region89: #{tpu_custom_call.1} parent=1 // pred_fallthru
      _
    // Predicated region
    $region90: #{tpu_custom_call.1} parent=1 // pred_check
      _
    $region91: #{tpu_custom_call.1} parent=1 // pred_check_branch
      %158 = sbr.rel (0) target = $region93
    $region92: #{tpu_custom_call.1} parent=1 // pred_region
      %159 = dma.done [#allocation12], 2048
    $region93: #{tpu_custom_call.1} parent=1 // pred_fallthru
      _
    // Predicated region
    $region94: #{tpu_custom_call.1} parent=1 // pred_check
      _
    $region95: #{tpu_custom_call.1} parent=1 // pred_check_branch
      %161 = sbr.rel (0) target = $region97
    $region96: #{tpu_custom_call.1} parent=1 // pred_region
      %162 = dma.done [#allocation15], 2048
    $region97: #{tpu_custom_call.1} parent=1 // pred_fallthru
      _
    %v163 = vld [vmem:[%s1] sm:$0xff]
    %v164 = vld [vmem:[%s1 + $0x8] sm:$0xff]
    %v165 = vld [vmem:[%s0] sm:$0xff]
    %v166 = vld [vmem:[%s2] sm:$0xf]
    %v167 = vld [vmem:[%s2 + $0x4] sm:$0xf]
    %v168 = vld [vmem:[%s2 + $0x8] sm:$0xf]
    %v169 = vld [vmem:[%s2 + $0xc] sm:$0xf]
    %v170 = vld [vmem:[%s2 + $0x10] sm:$0xf]
    %v171 = vld [vmem:[%s2 + $0x14] sm:$0xf]
    %v172 = vld [vmem:[%s2 + $0x18] sm:$0xf]
    %v173 = vld [vmem:[%s2 + $0x1c] sm:$0xf]
    %v174 = vunpack.c.l.bf16 %v166
    %v175 = vunpack.c.l.bf16 %v167
    %v176 = vunpack.c.l.bf16 %v168
    %v177 = vunpack.c.l.bf16 %v169
    %v178 = vunpack.c.l.bf16 %v170
    %v179 = vunpack.c.l.bf16 %v171
    %v180 = vunpack.c.l.bf16 %v172
    %v181 = vunpack.c.l.bf16 %v173
    %v182 = vld [vmem:[%s3] sm:$0xf]
    %v183 = vunpack.c.l.bf16 %v182
    %v184 = vld [vmem:[#allocation8] sm:$0xff]
    %v185 = vld [vmem:[#allocation8 + $0x8] sm:$0xff]
    %v186 = vld [vmem:[#allocation8 + $0x10] sm:$0xff]
    %v187 = vld [vmem:[#allocation8 + $0x18] sm:$0xff]
    %v188 = vld [vmem:[#allocation8 + $0x20] sm:$0xff]
    %v189 = vld [vmem:[#allocation8 + $0x28] sm:$0xff]
    %v190 = vld [vmem:[#allocation8 + $0x30] sm:$0xff]
    %v191 = vld [vmem:[#allocation8 + $0x38] sm:$0xff]
    %v192 = vld [vmem:[#allocation8 + $0x40] sm:$0xff]
    %v193 = vld [vmem:[#allocation8 + $0x48] sm:$0xff]
    %v194 = vld [vmem:[#allocation8 + $0x50] sm:$0xff]
    %v195 = vld [vmem:[#allocation8 + $0x58] sm:$0xff]
    %v196 = vld [vmem:[#allocation8 + $0x60] sm:$0xff]
    %v197 = vld [vmem:[#allocation8 + $0x68] sm:$0xff]
    %v198 = vld [vmem:[#allocation8 + $0x70] sm:$0xff]
    %v199 = vld [vmem:[#allocation8 + $0x78] sm:$0xff]
    %v200 = vld [vmem:[#allocation5] sm:$0xff]
    %v201 = vld [vmem:[#allocation5 + $0x8] sm:$0xff]
    %v202 = vld [vmem:[#allocation5 + $0x10] sm:$0xff]
    %v203 = vld [vmem:[#allocation5 + $0x18] sm:$0xff]
    %v204 = vld [vmem:[#allocation5 + $0x20] sm:$0xff]
    %v205 = vld [vmem:[#allocation5 + $0x28] sm:$0xff]
    %v206 = vld [vmem:[#allocation5 + $0x30] sm:$0xff]
    %v207 = vld [vmem:[#allocation5 + $0x38] sm:$0xff]
    %v208 = vld [vmem:[#allocation5 + $0x40] sm:$0xff]
    %v209 = vld [vmem:[#allocation5 + $0x48] sm:$0xff]
    %v210 = vld [vmem:[#allocation5 + $0x50] sm:$0xff]
    %v211 = vld [vmem:[#allocation5 + $0x58] sm:$0xff]
    %v212 = vld [vmem:[#allocation5 + $0x60] sm:$0xff]
    %v213 = vld [vmem:[#allocation5 + $0x68] sm:$0xff]
    %v214 = vld [vmem:[#allocation5 + $0x70] sm:$0xff]
    %v215 = vld [vmem:[#allocation5 + $0x78] sm:$0xff]
    %v216 = vld [vmem:[#allocation11] sm:$0xff]
    %v217 = vld [vmem:[#allocation11 + $0x8] sm:$0xff]
    %v218 = vld [vmem:[#allocation11 + $0x10] sm:$0xff]
    %v219 = vld [vmem:[#allocation11 + $0x18] sm:$0xff]
    %v220 = vld [vmem:[#allocation11 + $0x20] sm:$0xff]
    %v221 = vld [vmem:[#allocation11 + $0x28] sm:$0xff]
    %v222 = vld [vmem:[#allocation11 + $0x30] sm:$0xff]
    %v223 = vld [vmem:[#allocation11 + $0x38] sm:$0xff]
    %v224 = vld [vmem:[#allocation11 + $0x40] sm:$0xff]
    %v225 = vld [vmem:[#allocation11 + $0x48] sm:$0xff]
    %v226 = vld [vmem:[#allocation11 + $0x50] sm:$0xff]
    %v227 = vld [vmem:[#allocation11 + $0x58] sm:$0xff]
    %v228 = vld [vmem:[#allocation11 + $0x60] sm:$0xff]
    %v229 = vld [vmem:[#allocation11 + $0x68] sm:$0xff]
    %v230 = vld [vmem:[#allocation11 + $0x70] sm:$0xff]
    %v231 = vld [vmem:[#allocation11 + $0x78] sm:$0xff]
    %v232 = vld [vmem:[#allocation7] sm:$0xff]
    %v233 = vld [vmem:[#allocation7 + $0x8] sm:$0xff]
    %v234 = vld [vmem:[#allocation7 + $0x10] sm:$0xff]
    %v235 = vld [vmem:[#allocation7 + $0x18] sm:$0xff]
    %v236 = vld [vmem:[#allocation7 + $0x20] sm:$0xff]
    %v237 = vld [vmem:[#allocation7 + $0x28] sm:$0xff]
    %v238 = vld [vmem:[#allocation7 + $0x30] sm:$0xff]
    %v239 = vld [vmem:[#allocation7 + $0x38] sm:$0xff]
    %v240 = vld [vmem:[#allocation7 + $0x40] sm:$0xff]
    %v241 = vld [vmem:[#allocation7 + $0x48] sm:$0xff]
    %v242 = vld [vmem:[#allocation7 + $0x50] sm:$0xff]
    %v243 = vld [vmem:[#allocation7 + $0x58] sm:$0xff]
    %v244 = vld [vmem:[#allocation7 + $0x60] sm:$0xff]
    %v245 = vld [vmem:[#allocation7 + $0x68] sm:$0xff]
    %v246 = vld [vmem:[#allocation7 + $0x70] sm:$0xff]
    %v247 = vld [vmem:[#allocation7 + $0x78] sm:$0xff]
    %v248 = vld [vmem:[%s9] sm:$0x1]
    %v250 = vlaneseq
    %v251 = vshrl.u32 %v250, 7
    %v252 = vsub.s32 0, %v251
    %v253 = vrot.slane %v248, %v252
    %255 = vmatprep.subr.mxu0 0.0
    %256 = vmatpush1.msra.mxu0 %v247
    %257 = vmatprep.subr.mxu0 0.0
    %258 = vmatpush1.msra.mxu0 %v246
    %259 = vmatprep.subr.mxu0 0.0
    %260 = vmatpush1.msra.mxu0 %v245
    %261 = vmatprep.subr.mxu0 0.0
    %262 = vmatpush1.msra.mxu0 %v244
    %263 = vmatprep.subr.mxu0 0.0
    %264 = vmatpush1.msra.mxu0 %v243
    %265 = vmatprep.subr.mxu0 0.0
    %266 = vmatpush1.msra.mxu0 %v242
    %267 = vmatprep.subr.mxu0 0.0
    %268 = vmatpush1.msra.mxu0 %v241
    %269 = vmatprep.subr.mxu0 0.0
    %270 = vmatpush1.msra.mxu0 %v240
    %271 = vmatprep.subr.mxu0 0.0
    %272 = vmatpush1.msra.mxu0 %v239
    %273 = vmatprep.subr.mxu0 0.0
    %274 = vmatpush1.msra.mxu0 %v238
    %275 = vmatprep.subr.mxu0 0.0
    %276 = vmatpush1.msra.mxu0 %v237
    %277 = vmatprep.subr.mxu0 0.0
    %278 = vmatpush1.msra.mxu0 %v236
    %279 = vmatprep.subr.mxu0 0.0
    %280 = vmatpush1.msra.mxu0 %v235
    %281 = vmatprep.subr.mxu0 0.0
    %282 = vmatpush1.msra.mxu0 %v234
    %283 = vmatprep.subr.mxu0 0.0
    %284 = vmatpush1.msra.mxu0 %v233
    %285 = vmatprep.subr.mxu0 0.0
    %286 = vmatpush1.msra.mxu0 %v232
    %287 = vmatprep.subr.mxu0 0.0
    %288 = vmatpush2.msra.mxu0 0.0
    %289 = vmatprep.subr.mxu0 0.0
    %290 = vmatpush2.msra.mxu0 0.0
    %291 = vmatprep.subr.mxu0 0.0
    %292 = vmatpush2.msra.mxu0 0.0
    %293 = vmatprep.subr.mxu0 0.0
    %294 = vmatpush2.msra.mxu0 0.0
    %295 = vmatprep.subr.mxu0 0.0
    %296 = vmatpush2.msra.mxu0 0.0
    %297 = vmatprep.subr.mxu0 0.0
    %298 = vmatpush2.msra.mxu0 0.0
    %299 = vmatprep.subr.mxu0 0.0
    %300 = vmatpush2.msra.mxu0 0.0
    %301 = vmatprep.subr.mxu0 0.0
    %302 = vmatpush2.msra.mxu0 0.0
    %303 = vmatprep.subr.mxu0 0.0
    %304 = vmatpush2.msra.mxu0 0.0
    %305 = vmatprep.subr.mxu0 0.0
    %306 = vmatpush2.msra.mxu0 0.0
    %307 = vmatprep.subr.mxu0 0.0
    %308 = vmatpush2.msra.mxu0 0.0
    %309 = vmatprep.subr.mxu0 0.0
    %310 = vmatpush2.msra.mxu0 0.0
    %311 = vmatprep.subr.mxu0 0.0
    %312 = vmatpush2.msra.mxu0 0.0
    %313 = vmatprep.subr.mxu0 0.0
    %314 = vmatpush2.msra.mxu0 0.0
    %315 = vmatprep.subr.mxu0 0.0
    %316 = vmatpush2.msra.mxu0 0.0
    %317 = vmatprep.subr.mxu0 0.0
    %318 = vmatpush2.msra.mxu0 0.0
    %319 = vmatprep.mubr.f32.mxu0 0.0
    %320 = vmatmul.mubr.f32.gmra.mxu0 %v163
    %v321 = vpop.f32.mrf.mxu0
    %v322 = vadd.f32 %v253, %v321
    %v323 = vpop.f32.mrf.mxu0
    %324 = vmatprep.mubr.f32.mxu0 0.0
    %325 = vmatmul.mubr.f32.gmra.mxu0 %v164
    %v326 = vpop.f32.mrf.mxu0
    %v327 = vadd.f32 %v253, %v326
    %v328 = vpop.f32.mrf.mxu0
    %329 = vdwg.mxu0
    %v330 = vld [vmem:[#allocation2] sm:$0xff]
    %v331 = vld [vmem:[#allocation2 + $0x8] sm:$0xff]
    %v332 = vld [vmem:[#allocation2 + $0x10] sm:$0xff]
    %v333 = vld [vmem:[#allocation2 + $0x18] sm:$0xff]
    %v334 = vld [vmem:[#allocation2 + $0x20] sm:$0xff]
    %v335 = vld [vmem:[#allocation2 + $0x28] sm:$0xff]
    %v336 = vld [vmem:[#allocation2 + $0x30] sm:$0xff]
    %v337 = vld [vmem:[#allocation2 + $0x38] sm:$0xff]
    %v338 = vld [vmem:[#allocation2 + $0x40] sm:$0xff]
    %v339 = vld [vmem:[#allocation2 + $0x48] sm:$0xff]
    %v340 = vld [vmem:[#allocation2 + $0x50] sm:$0xff]
    %v341 = vld [vmem:[#allocation2 + $0x58] sm:$0xff]
    %v342 = vld [vmem:[#allocation2 + $0x60] sm:$0xff]
    %v343 = vld [vmem:[#allocation2 + $0x68] sm:$0xff]
    %v344 = vld [vmem:[#allocation2 + $0x70] sm:$0xff]
    %v345 = vld [vmem:[#allocation2 + $0x78] sm:$0xff]
    %v346 = vld [vmem:[%s6] sm:$0x1]
    %v348 = vlaneseq
    %v349 = vshrl.u32 %v348, 7
    %v350 = vsub.s32 0, %v349
    %v351 = vrot.slane %v346, %v350
    %353 = vmatprep.subr.mxu0 0.0
    %354 = vmatpush1.msra.mxu0 %v345
    %355 = vmatprep.subr.mxu0 0.0
    %356 = vmatpush1.msra.mxu0 %v344
    %357 = vmatprep.subr.mxu0 0.0
    %358 = vmatpush1.msra.mxu0 %v343
    %359 = vmatprep.subr.mxu0 0.0
    %360 = vmatpush1.msra.mxu0 %v342
    %361 = vmatprep.subr.mxu0 0.0
    %362 = vmatpush1.msra.mxu0 %v341
    %363 = vmatprep.subr.mxu0 0.0
    %364 = vmatpush1.msra.mxu0 %v340
    %365 = vmatprep.subr.mxu0 0.0
    %366 = vmatpush1.msra.mxu0 %v339
    %367 = vmatprep.subr.mxu0 0.0
    %368 = vmatpush1.msra.mxu0 %v338
    %369 = vmatprep.subr.mxu0 0.0
    %370 = vmatpush1.msra.mxu0 %v337
    %371 = vmatprep.subr.mxu0 0.0
    %372 = vmatpush1.msra.mxu0 %v336
    %373 = vmatprep.subr.mxu0 0.0
    %374 = vmatpush1.msra.mxu0 %v335
    %375 = vmatprep.subr.mxu0 0.0
    %376 = vmatpush1.msra.mxu0 %v334
    %377 = vmatprep.subr.mxu0 0.0
    %378 = vmatpush1.msra.mxu0 %v333
    %379 = vmatprep.subr.mxu0 0.0
    %380 = vmatpush1.msra.mxu0 %v332
    %381 = vmatprep.subr.mxu0 0.0
    %382 = vmatpush1.msra.mxu0 %v331
    %383 = vmatprep.subr.mxu0 0.0
    %384 = vmatpush1.msra.mxu0 %v330
    %385 = vmatprep.subr.mxu0 0.0
    %386 = vmatpush2.msra.mxu0 0.0
    %387 = vmatprep.subr.mxu0 0.0
    %388 = vmatpush2.msra.mxu0 0.0
    %389 = vmatprep.subr.mxu0 0.0
    %390 = vmatpush2.msra.mxu0 0.0
    %391 = vmatprep.subr.mxu0 0.0
    %392 = vmatpush2.msra.mxu0 0.0
    %393 = vmatprep.subr.mxu0 0.0
    %394 = vmatpush2.msra.mxu0 0.0
    %395 = vmatprep.subr.mxu0 0.0
    %396 = vmatpush2.msra.mxu0 0.0
    %397 = vmatprep.subr.mxu0 0.0
    %398 = vmatpush2.msra.mxu0 0.0
    %399 = vmatprep.subr.mxu0 0.0
    %400 = vmatpush2.msra.mxu0 0.0
    %401 = vmatprep.subr.mxu0 0.0
    %402 = vmatpush2.msra.mxu0 0.0
    %403 = vmatprep.subr.mxu0 0.0
    %404 = vmatpush2.msra.mxu0 0.0
    %405 = vmatprep.subr.mxu0 0.0
    %406 = vmatpush2.msra.mxu0 0.0
    %407 = vmatprep.subr.mxu0 0.0
    %408 = vmatpush2.msra.mxu0 0.0
    %409 = vmatprep.subr.mxu0 0.0
    %410 = vmatpush2.msra.mxu0 0.0
    %411 = vmatprep.subr.mxu0 0.0
    %412 = vmatpush2.msra.mxu0 0.0
    %413 = vmatprep.subr.mxu0 0.0
    %414 = vmatpush2.msra.mxu0 0.0
    %415 = vmatprep.subr.mxu0 0.0
    %416 = vmatpush2.msra.mxu0 0.0
    %417 = vmatprep.mubr.f32.mxu0 0.0
    %418 = vmatmul.mubr.f32.gmra.mxu0 %v163
    %v419 = vpop.f32.mrf.mxu0
    %v420 = vadd.f32 %v351, %v419
    %v421 = vpop.f32.mrf.mxu0
    %422 = vmatprep.mubr.f32.mxu0 0.0
    %423 = vmatmul.mubr.f32.gmra.mxu0 %v164
    %v424 = vpop.f32.mrf.mxu0
    %v425 = vadd.f32 %v351, %v424
    %v426 = vpop.f32.mrf.mxu0
    %427 = vdwg.mxu0
    %v428 = vld [vmem:[#allocation10] sm:$0xff]
    %v429 = vld [vmem:[#allocation10 + $0x8] sm:$0xff]
    %v430 = vld [vmem:[#allocation10 + $0x10] sm:$0xff]
    %v431 = vld [vmem:[#allocation10 + $0x18] sm:$0xff]
    %v432 = vld [vmem:[#allocation10 + $0x20] sm:$0xff]
    %v433 = vld [vmem:[#allocation10 + $0x28] sm:$0xff]
    %v434 = vld [vmem:[#allocation10 + $0x30] sm:$0xff]
    %v435 = vld [vmem:[#allocation10 + $0x38] sm:$0xff]
    %v436 = vld [vmem:[#allocation10 + $0x40] sm:$0xff]
    %v437 = vld [vmem:[#allocation10 + $0x48] sm:$0xff]
    %v438 = vld [vmem:[#allocation10 + $0x50] sm:$0xff]
    %v439 = vld [vmem:[#allocation10 + $0x58] sm:$0xff]
    %v440 = vld [vmem:[#allocation10 + $0x60] sm:$0xff]
    %v441 = vld [vmem:[#allocation10 + $0x68] sm:$0xff]
    %v442 = vld [vmem:[#allocation10 + $0x70] sm:$0xff]
    %v443 = vld [vmem:[#allocation10 + $0x78] sm:$0xff]
    %v444 = vld [vmem:[%s12] sm:$0x1]
    %v446 = vlaneseq
    %v447 = vshrl.u32 %v446, 7
    %v448 = vsub.s32 0, %v447
    %v449 = vrot.slane %v444, %v448
    %451 = vmatprep.subr.mxu0 0.0
    %452 = vmatpush1.msra.mxu0 %v443
    %453 = vmatprep.subr.mxu0 0.0
    %454 = vmatpush1.msra.mxu0 %v442
    %455 = vmatprep.subr.mxu0 0.0
    %456 = vmatpush1.msra.mxu0 %v441
    %457 = vmatprep.subr.mxu0 0.0
    %458 = vmatpush1.msra.mxu0 %v440
    %459 = vmatprep.subr.mxu0 0.0
    %460 = vmatpush1.msra.mxu0 %v439
    %461 = vmatprep.subr.mxu0 0.0
    %462 = vmatpush1.msra.mxu0 %v438
    %463 = vmatprep.subr.mxu0 0.0
    %464 = vmatpush1.msra.mxu0 %v437
    %465 = vmatprep.subr.mxu0 0.0
    %466 = vmatpush1.msra.mxu0 %v436
    %467 = vmatprep.subr.mxu0 0.0
    %468 = vmatpush1.msra.mxu0 %v435
    %469 = vmatprep.subr.mxu0 0.0
    %470 = vmatpush1.msra.mxu0 %v434
    %471 = vmatprep.subr.mxu0 0.0
    %472 = vmatpush1.msra.mxu0 %v433
    %473 = vmatprep.subr.mxu0 0.0
    %474 = vmatpush1.msra.mxu0 %v432
    %475 = vmatprep.subr.mxu0 0.0
    %476 = vmatpush1.msra.mxu0 %v431
    %477 = vmatprep.subr.mxu0 0.0
    %478 = vmatpush1.msra.mxu0 %v430
    %479 = vmatprep.subr.mxu0 0.0
    %480 = vmatpush1.msra.mxu0 %v429
    %481 = vmatprep.subr.mxu0 0.0
    %482 = vmatpush1.msra.mxu0 %v428
    %483 = vmatprep.subr.mxu0 0.0
    %484 = vmatpush2.msra.mxu0 0.0
    %485 = vmatprep.subr.mxu0 0.0
    %486 = vmatpush2.msra.mxu0 0.0
    %487 = vmatprep.subr.mxu0 0.0
    %488 = vmatpush2.msra.mxu0 0.0
    %489 = vmatprep.subr.mxu0 0.0
    %490 = vmatpush2.msra.mxu0 0.0
    %491 = vmatprep.subr.mxu0 0.0
    %492 = vmatpush2.msra.mxu0 0.0
    %493 = vmatprep.subr.mxu0 0.0
    %494 = vmatpush2.msra.mxu0 0.0
    %495 = vmatprep.subr.mxu0 0.0
    %496 = vmatpush2.msra.mxu0 0.0
    %497 = vmatprep.subr.mxu0 0.0
    %498 = vmatpush2.msra.mxu0 0.0
    %499 = vmatprep.subr.mxu0 0.0
    %500 = vmatpush2.msra.mxu0 0.0
    %501 = vmatprep.subr.mxu0 0.0
    %502 = vmatpush2.msra.mxu0 0.0
    %503 = vmatprep.subr.mxu0 0.0
    %504 = vmatpush2.msra.mxu0 0.0
    %505 = vmatprep.subr.mxu0 0.0
    %506 = vmatpush2.msra.mxu0 0.0
    %507 = vmatprep.subr.mxu0 0.0
    %508 = vmatpush2.msra.mxu0 0.0
    %509 = vmatprep.subr.mxu0 0.0
    %510 = vmatpush2.msra.mxu0 0.0
    %511 = vmatprep.subr.mxu0 0.0
    %512 = vmatpush2.msra.mxu0 0.0
    %513 = vmatprep.subr.mxu0 0.0
    %514 = vmatpush2.msra.mxu0 0.0
    %515 = vmatprep.mubr.f32.mxu0 0.0
    %516 = vmatmul.mubr.f32.gmra.mxu0 %v163
    %v517 = vpop.f32.mrf.mxu0
    %v518 = vadd.f32 %v449, %v517
    %v519 = vpop.f32.mrf.mxu0
    %520 = vmatprep.mubr.f32.mxu0 0.0
    %521 = vmatmul.mubr.f32.gmra.mxu0 %v164
    %v522 = vpop.f32.mrf.mxu0
    %v523 = vadd.f32 %v449, %v522
    %v524 = vpop.f32.mrf.mxu0
    %525 = vdwg.mxu0
    loop: start=0, step=1, limit=3
    $region98: #{tpu_custom_call.1} parent=1 // loop_pre_header
      _
    $region99: #{tpu_custom_call.1} parent=1 // loop_header
      %s527 = sphi 0, %s531
      %p528 = scmp.ge.s32.totalorder %s527, 3
      %v532 = vphi 0.0, %v1023
      %v533 = vphi 0.0, %v1024
    $region100: #{tpu_custom_call.1} parent=1 // loop_header_branch
      %530 = sbr.rel (%p528) target = $region104
    $region101: #{tpu_custom_call.1} parent=1 // loop_body
      %vm534 = vcmask 130048
      %v536 = vsel %vm534, %v174, 0
      %v539 = vsel %vm534, %v175, 0
      %v542 = vsel %vm534, %v176, 0
      %v545 = vsel %vm534, %v177, 0
      %v548 = vsel %vm534, %v178, 0
      %v551 = vsel %vm534, %v179, 0
      %v554 = vsel %vm534, %v180, 0
      %v557 = vsel %vm534, %v181, 0
      %559 = vmatprep.subr.mxu0 0.0
      %560 = vmatpush1.msra.mxu0 0.0
      %561 = vmatprep.subr.mxu0 0.0
      %562 = vmatpush1.msra.mxu0 0.0
      %563 = vmatprep.subr.mxu0 0.0
      %564 = vmatpush1.msra.mxu0 0.0
      %565 = vmatprep.subr.mxu0 0.0
      %566 = vmatpush1.msra.mxu0 0.0
      %567 = vmatprep.subr.mxu0 0.0
      %568 = vmatpush1.msra.mxu0 0.0
      %569 = vmatprep.subr.mxu0 0.0
      %570 = vmatpush1.msra.mxu0 0.0
      %571 = vmatprep.subr.mxu0 0.0
      %572 = vmatpush1.msra.mxu0 0.0
      %573 = vmatprep.subr.mxu0 0.0
      %574 = vmatpush1.msra.mxu0 0.0
      %575 = vmatprep.subr.mxu0 0.0
      %576 = vmatpush1.msra.mxu0 0.0
      %577 = vmatprep.subr.mxu0 0.0
      %578 = vmatpush1.msra.mxu0 0.0
      %579 = vmatprep.subr.mxu0 0.0
      %580 = vmatpush1.msra.mxu0 0.0
      %581 = vmatprep.subr.mxu0 0.0
      %582 = vmatpush1.msra.mxu0 0.0
      %583 = vmatprep.subr.mxu0 0.0
      %584 = vmatpush1.msra.mxu0 0.0
      %585 = vmatprep.subr.mxu0 0.0
      %586 = vmatpush1.msra.mxu0 0.0
      %587 = vmatprep.subr.mxu0 0.0
      %588 = vmatpush1.msra.mxu0 %v533
      %589 = vmatprep.subr.mxu0 0.0
      %590 = vmatpush1.msra.mxu0 %v532
      %591 = vmatprep.subr.mxu0 0.0
      %592 = vmatpush2.msra.mxu0 0.0
      %593 = vmatprep.subr.mxu0 0.0
      %594 = vmatpush2.msra.mxu0 0.0
      %595 = vmatprep.subr.mxu0 0.0
      %596 = vmatpush2.msra.mxu0 0.0
      %597 = vmatprep.subr.mxu0 0.0
      %598 = vmatpush2.msra.mxu0 0.0
      %599 = vmatprep.subr.mxu0 0.0
      %600 = vmatpush2.msra.mxu0 0.0
      %601 = vmatprep.subr.mxu0 0.0
      %602 = vmatpush2.msra.mxu0 0.0
      %603 = vmatprep.subr.mxu0 0.0
      %604 = vmatpush2.msra.mxu0 0.0
      %605 = vmatprep.subr.mxu0 0.0
      %606 = vmatpush2.msra.mxu0 0.0
      %607 = vmatprep.subr.mxu0 0.0
      %608 = vmatpush2.msra.mxu0 0.0
      %609 = vmatprep.subr.mxu0 0.0
      %610 = vmatpush2.msra.mxu0 0.0
      %611 = vmatprep.subr.mxu0 0.0
      %612 = vmatpush2.msra.mxu0 0.0
      %613 = vmatprep.subr.mxu0 0.0
      %614 = vmatpush2.msra.mxu0 0.0
      %615 = vmatprep.subr.mxu0 0.0
      %616 = vmatpush2.msra.mxu0 0.0
      %617 = vmatprep.subr.mxu0 0.0
      %618 = vmatpush2.msra.mxu0 0.0
      %619 = vmatprep.subr.mxu0 0.0
      %620 = vmatpush2.msra.mxu0 0.0
      %621 = vmatprep.subr.mxu0 0.0
      %622 = vmatpush2.msra.mxu0 0.0
      %623 = vmatprep.mubr.f32.mxu0 0.0
      %624 = vmatmul.mubr.f32.gmra.mxu0 %v536
      %v625 = vpop.f32.mrf.mxu0
      %v626 = vadd.f32 0.0, %v625
      %v627 = vpop.f32.mrf.mxu0
      %628 = vmatprep.mubr.f32.mxu0 0.0
      %629 = vmatmul.mubr.f32.gmra.mxu0 %v539
      %v630 = vpop.f32.mrf.mxu0
      %v631 = vadd.f32 0.0, %v630
      %v632 = vpop.f32.mrf.mxu0
      %633 = vmatprep.mubr.f32.mxu0 0.0
      %634 = vmatmul.mubr.f32.gmra.mxu0 %v542
      %v635 = vpop.f32.mrf.mxu0
      %v636 = vadd.f32 0.0, %v635
      %v637 = vpop.f32.mrf.mxu0
      %638 = vmatprep.mubr.f32.mxu0 0.0
      %639 = vmatmul.mubr.f32.gmra.mxu0 %v545
      %v640 = vpop.f32.mrf.mxu0
      %v641 = vadd.f32 0.0, %v640
      %v642 = vpop.f32.mrf.mxu0
      %643 = vmatprep.mubr.f32.mxu0 0.0
      %644 = vmatmul.mubr.f32.gmra.mxu0 %v548
      %v645 = vpop.f32.mrf.mxu0
      %v646 = vadd.f32 0.0, %v645
      %v647 = vpop.f32.mrf.mxu0
      %648 = vmatprep.mubr.f32.mxu0 0.0
      %649 = vmatmul.mubr.f32.gmra.mxu0 %v551
      %v650 = vpop.f32.mrf.mxu0
      %v651 = vadd.f32 0.0, %v650
      %v652 = vpop.f32.mrf.mxu0
      %653 = vmatprep.mubr.f32.mxu0 0.0
      %654 = vmatmul.mubr.f32.gmra.mxu0 %v554
      %v655 = vpop.f32.mrf.mxu0
      %v656 = vadd.f32 0.0, %v655
      %v657 = vpop.f32.mrf.mxu0
      %658 = vmatprep.mubr.f32.mxu0 0.0
      %659 = vmatmul.mubr.f32.gmra.mxu0 %v557
      %v660 = vpop.f32.mrf.mxu0
      %v661 = vadd.f32 0.0, %v660
      %v662 = vpop.f32.mrf.mxu0
      %663 = vdwg.mxu0
      %664 = vmatprep.subr.mxu0 0.0
      %665 = vmatpush1.msra.mxu0 %v199
      %666 = vmatprep.subr.mxu0 0.0
      %667 = vmatpush1.msra.mxu0 %v198
      %668 = vmatprep.subr.mxu0 0.0
      %669 = vmatpush1.msra.mxu0 %v197
      %670 = vmatprep.subr.mxu0 0.0
      %671 = vmatpush1.msra.mxu0 %v196
      %672 = vmatprep.subr.mxu0 0.0
      %673 = vmatpush1.msra.mxu0 %v195
      %674 = vmatprep.subr.mxu0 0.0
      %675 = vmatpush1.msra.mxu0 %v194
      %676 = vmatprep.subr.mxu0 0.0
      %677 = vmatpush1.msra.mxu0 %v193
      %678 = vmatprep.subr.mxu0 0.0
      %679 = vmatpush1.msra.mxu0 %v192
      %680 = vmatprep.subr.mxu0 0.0
      %681 = vmatpush1.msra.mxu0 %v191
      %682 = vmatprep.subr.mxu0 0.0
      %683 = vmatpush1.msra.mxu0 %v190
      %684 = vmatprep.subr.mxu0 0.0
      %685 = vmatpush1.msra.mxu0 %v189
      %686 = vmatprep.subr.mxu0 0.0
      %687 = vmatpush1.msra.mxu0 %v188
      %688 = vmatprep.subr.mxu0 0.0
      %689 = vmatpush1.msra.mxu0 %v187
      %690 = vmatprep.subr.mxu0 0.0
      %691 = vmatpush1.msra.mxu0 %v186
      %692 = vmatprep.subr.mxu0 0.0
      %693 = vmatpush1.msra.mxu0 %v185
      %694 = vmatprep.subr.mxu0 0.0
      %695 = vmatpush1.msra.mxu0 %v184
      %696 = vmatprep.subr.mxu0 0.0
      %697 = vmatpush2.msra.mxu0 0.0
      %698 = vmatprep.subr.mxu0 0.0
      %699 = vmatpush2.msra.mxu0 0.0
      %700 = vmatprep.subr.mxu0 0.0
      %701 = vmatpush2.msra.mxu0 0.0
      %702 = vmatprep.subr.mxu0 0.0
      %703 = vmatpush2.msra.mxu0 0.0
      %704 = vmatprep.subr.mxu0 0.0
      %705 = vmatpush2.msra.mxu0 0.0
      %706 = vmatprep.subr.mxu0 0.0
      %707 = vmatpush2.msra.mxu0 0.0
      %708 = vmatprep.subr.mxu0 0.0
      %709 = vmatpush2.msra.mxu0 0.0
      %710 = vmatprep.subr.mxu0 0.0
      %711 = vmatpush2.msra.mxu0 0.0
      %712 = vmatprep.subr.mxu0 0.0
      %713 = vmatpush2.msra.mxu0 0.0
      %714 = vmatprep.subr.mxu0 0.0
      %715 = vmatpush2.msra.mxu0 0.0
      %716 = vmatprep.subr.mxu0 0.0
      %717 = vmatpush2.msra.mxu0 0.0
      %718 = vmatprep.subr.mxu0 0.0
      %719 = vmatpush2.msra.mxu0 0.0
      %720 = vmatprep.subr.mxu0 0.0
      %721 = vmatpush2.msra.mxu0 0.0
      %722 = vmatprep.subr.mxu0 0.0
      %723 = vmatpush2.msra.mxu0 0.0
      %724 = vmatprep.subr.mxu0 0.0
      %725 = vmatpush2.msra.mxu0 0.0
      %726 = vmatprep.subr.mxu0 0.0
      %727 = vmatpush2.msra.mxu0 0.0
      %728 = vmatprep.mubr.f32.mxu0 0.0
      %729 = vmatmul.mubr.f32.gmra.mxu0 %v626
      %v730 = vpop.f32.mrf.mxu0
      %v731 = vadd.f32 0.0, %v730
      %v732 = vpop.f32.mrf.mxu0
      %733 = vmatprep.mubr.f32.mxu0 0.0
      %734 = vmatmul.mubr.f32.gmra.mxu0 %v631
      %v735 = vpop.f32.mrf.mxu0
      %v736 = vadd.f32 0.0, %v735
      %v737 = vpop.f32.mrf.mxu0
      %738 = vmatprep.mubr.f32.mxu0 0.0
      %739 = vmatmul.mubr.f32.gmra.mxu0 %v636
      %v740 = vpop.f32.mrf.mxu0
      %v741 = vadd.f32 0.0, %v740
      %v742 = vpop.f32.mrf.mxu0
      %743 = vmatprep.mubr.f32.mxu0 0.0
      %744 = vmatmul.mubr.f32.gmra.mxu0 %v641
      %v745 = vpop.f32.mrf.mxu0
      %v746 = vadd.f32 0.0, %v745
      %v747 = vpop.f32.mrf.mxu0
      %748 = vmatprep.mubr.f32.mxu0 0.0
      %749 = vmatmul.mubr.f32.gmra.mxu0 %v646
      %v750 = vpop.f32.mrf.mxu0
      %v751 = vadd.f32 0.0, %v750
      %v752 = vpop.f32.mrf.mxu0
      %753 = vmatprep.mubr.f32.mxu0 0.0
      %754 = vmatmul.mubr.f32.gmra.mxu0 %v651
      %v755 = vpop.f32.mrf.mxu0
      %v756 = vadd.f32 0.0, %v755
      %v757 = vpop.f32.mrf.mxu0
      %758 = vmatprep.mubr.f32.mxu0 0.0
      %759 = vmatmul.mubr.f32.gmra.mxu0 %v656
      %v760 = vpop.f32.mrf.mxu0
      %v761 = vadd.f32 0.0, %v760
      %v762 = vpop.f32.mrf.mxu0
      %763 = vmatprep.mubr.f32.mxu0 0.0
      %764 = vmatmul.mubr.f32.gmra.mxu0 %v661
      %v765 = vpop.f32.mrf.mxu0
      %v766 = vadd.f32 0.0, %v765
      %v767 = vpop.f32.mrf.mxu0
      %768 = vdwg.mxu0
      %v769 = vadd.f32 %v322, %v731
      %v770 = vadd.f32 %v327, %v736
      %v771 = vxor.u32 %v769, 2147483648
      %v772 = vxor.u32 %v770, 2147483648
      %v773 = vmul.f32 %v771, 1.442695
      %v774 = vpow.pop %v773
      %v775 = vmul.f32 %v772, 1.442695
      %v776 = vpow.pop %v775
      %v777 = vadd.f32 %v774, 1.0
      %v778 = vadd.f32 %v776, 1.0
      %v779 = vrcp.pop %v777
      %v780 = vmul.f32 1.0, %v779
      %v781 = vrcp.pop %v778
      %v782 = vmul.f32 1.0, %v781
      %v783 = vadd.f32 %v626, 0.0
      %v784 = vadd.f32 %v631, 0.0
      %v785 = vmul.f32 %v780, %v626
      %v786 = vmul.f32 %v782, %v631
      %v787 = vadd.f32 %v785, 0.0
      %v788 = vadd.f32 %v786, 0.0
      %v789 = vadd.f32 %v322, %v741
      %v790 = vadd.f32 %v327, %v746
      %v791 = vxor.u32 %v789, 2147483648
      %v792 = vxor.u32 %v790, 2147483648
      %v793 = vmul.f32 %v791, 1.442695
      %v794 = vpow.pop %v793
      %v795 = vmul.f32 %v792, 1.442695
      %v796 = vpow.pop %v795
      %v797 = vadd.f32 %v794, 1.0
      %v798 = vadd.f32 %v796, 1.0
      %v799 = vrcp.pop %v797
      %v800 = vmul.f32 1.0, %v799
      %v801 = vrcp.pop %v798
      %v802 = vmul.f32 1.0, %v801
      %v803 = vadd.f32 %v783, %v636
      %v804 = vadd.f32 %v784, %v641
      %v805 = vmul.f32 %v800, %v636
      %v806 = vmul.f32 %v802, %v641
      %v807 = vadd.f32 %v787, %v805
      %v808 = vadd.f32 %v788, %v806
      %v809 = vadd.f32 %v322, %v751
      %v810 = vadd.f32 %v327, %v756
      %v811 = vxor.u32 %v809, 2147483648
      %v812 = vxor.u32 %v810, 2147483648
      %v813 = vmul.f32 %v811, 1.442695
      %v814 = vpow.pop %v813
      %v815 = vmul.f32 %v812, 1.442695
      %v816 = vpow.pop %v815
      %v817 = vadd.f32 %v814, 1.0
      %v818 = vadd.f32 %v816, 1.0
      %v819 = vrcp.pop %v817
      %v820 = vmul.f32 1.0, %v819
      %v821 = vrcp.pop %v818
      %v822 = vmul.f32 1.0, %v821
      %v823 = vadd.f32 %v803, %v646
      %v824 = vadd.f32 %v804, %v651
      %v825 = vmul.f32 %v820, %v646
      %v826 = vmul.f32 %v822, %v651
      %v827 = vadd.f32 %v807, %v825
      %v828 = vadd.f32 %v808, %v826
      %v829 = vadd.f32 %v322, %v761
      %v830 = vadd.f32 %v327, %v766
      %v831 = vxor.u32 %v829, 2147483648
      %v832 = vxor.u32 %v830, 2147483648
      %v833 = vmul.f32 %v831, 1.442695
      %v834 = vpow.pop %v833
      %v835 = vmul.f32 %v832, 1.442695
      %v836 = vpow.pop %v835
      %v837 = vadd.f32 %v834, 1.0
      %v838 = vadd.f32 %v836, 1.0
      %v839 = vrcp.pop %v837
      %v840 = vmul.f32 1.0, %v839
      %v841 = vrcp.pop %v838
      %v842 = vmul.f32 1.0, %v841
      %v843 = vadd.f32 %v823, %v656
      %v844 = vadd.f32 %v824, %v661
      %v845 = vmul.f32 %v840, %v656
      %v846 = vmul.f32 %v842, %v661
      %v847 = vadd.f32 %v827, %v845
      %v848 = vadd.f32 %v828, %v846
      %849 = vmatprep.subr.mxu0 0.0
      %850 = vmatpush1.msra.mxu0 %v215
      %851 = vmatprep.subr.mxu0 0.0
      %852 = vmatpush1.msra.mxu0 %v214
      %853 = vmatprep.subr.mxu0 0.0
      %854 = vmatpush1.msra.mxu0 %v213
      %855 = vmatprep.subr.mxu0 0.0
      %856 = vmatpush1.msra.mxu0 %v212
      %857 = vmatprep.subr.mxu0 0.0
      %858 = vmatpush1.msra.mxu0 %v211
      %859 = vmatprep.subr.mxu0 0.0
      %860 = vmatpush1.msra.mxu0 %v210
      %861 = vmatprep.subr.mxu0 0.0
      %862 = vmatpush1.msra.mxu0 %v209
      %863 = vmatprep.subr.mxu0 0.0
      %864 = vmatpush1.msra.mxu0 %v208
      %865 = vmatprep.subr.mxu0 0.0
      %866 = vmatpush1.msra.mxu0 %v207
      %867 = vmatprep.subr.mxu0 0.0
      %868 = vmatpush1.msra.mxu0 %v206
      %869 = vmatprep.subr.mxu0 0.0
      %870 = vmatpush1.msra.mxu0 %v205
      %871 = vmatprep.subr.mxu0 0.0
      %872 = vmatpush1.msra.mxu0 %v204
      %873 = vmatprep.subr.mxu0 0.0
      %874 = vmatpush1.msra.mxu0 %v203
      %875 = vmatprep.subr.mxu0 0.0
      %876 = vmatpush1.msra.mxu0 %v202
      %877 = vmatprep.subr.mxu0 0.0
      %878 = vmatpush1.msra.mxu0 %v201
      %879 = vmatprep.subr.mxu0 0.0
      %880 = vmatpush1.msra.mxu0 %v200
      %881 = vmatprep.subr.mxu0 0.0
      %882 = vmatpush2.msra.mxu0 0.0
      %883 = vmatprep.subr.mxu0 0.0
      %884 = vmatpush2.msra.mxu0 0.0
      %885 = vmatprep.subr.mxu0 0.0
      %886 = vmatpush2.msra.mxu0 0.0
      %887 = vmatprep.subr.mxu0 0.0
      %888 = vmatpush2.msra.mxu0 0.0
      %889 = vmatprep.subr.mxu0 0.0
      %890 = vmatpush2.msra.mxu0 0.0
      %891 = vmatprep.subr.mxu0 0.0
      %892 = vmatpush2.msra.mxu0 0.0
      %893 = vmatprep.subr.mxu0 0.0
      %894 = vmatpush2.msra.mxu0 0.0
      %895 = vmatprep.subr.mxu0 0.0
      %896 = vmatpush2.msra.mxu0 0.0
      %897 = vmatprep.subr.mxu0 0.0
      %898 = vmatpush2.msra.mxu0 0.0
      %899 = vmatprep.subr.mxu0 0.0
      %900 = vmatpush2.msra.mxu0 0.0
      %901 = vmatprep.subr.mxu0 0.0
      %902 = vmatpush2.msra.mxu0 0.0
      %903 = vmatprep.subr.mxu0 0.0
      %904 = vmatpush2.msra.mxu0 0.0
      %905 = vmatprep.subr.mxu0 0.0
      %906 = vmatpush2.msra.mxu0 0.0
      %907 = vmatprep.subr.mxu0 0.0
      %908 = vmatpush2.msra.mxu0 0.0
      %909 = vmatprep.subr.mxu0 0.0
      %910 = vmatpush2.msra.mxu0 0.0
      %911 = vmatprep.subr.mxu0 0.0
      %912 = vmatpush2.msra.mxu0 0.0
      %913 = vmatprep.mubr.f32.mxu0 0.0
      %914 = vmatmul.mubr.f32.gmra.mxu0 %v843
      %v915 = vpop.f32.mrf.mxu0
      %v916 = vadd.f32 0.0, %v915
      %v917 = vpop.f32.mrf.mxu0
      %918 = vmatprep.mubr.f32.mxu0 0.0
      %919 = vmatmul.mubr.f32.gmra.mxu0 %v844
      %v920 = vpop.f32.mrf.mxu0
      %v921 = vadd.f32 0.0, %v920
      %v922 = vpop.f32.mrf.mxu0
      %923 = vdwg.mxu0
      %v924 = vadd.f32 %v420, %v916
      %v925 = vadd.f32 %v425, %v921
      %v926 = vxor.u32 %v924, 2147483648
      %v927 = vxor.u32 %v925, 2147483648
      %v928 = vmul.f32 %v926, 1.442695
      %v929 = vpow.pop %v928
      %v930 = vmul.f32 %v927, 1.442695
      %v931 = vpow.pop %v930
      %v932 = vadd.f32 %v929, 1.0
      %v933 = vadd.f32 %v931, 1.0
      %v934 = vrcp.pop %v932
      %v935 = vmul.f32 1.0, %v934
      %v936 = vrcp.pop %v933
      %v937 = vmul.f32 1.0, %v936
      %938 = vmatprep.subr.mxu0 0.0
      %939 = vmatpush1.msra.mxu0 %v231
      %940 = vmatprep.subr.mxu0 0.0
      %941 = vmatpush1.msra.mxu0 %v230
      %942 = vmatprep.subr.mxu0 0.0
      %943 = vmatpush1.msra.mxu0 %v229
      %944 = vmatprep.subr.mxu0 0.0
      %945 = vmatpush1.msra.mxu0 %v228
      %946 = vmatprep.subr.mxu0 0.0
      %947 = vmatpush1.msra.mxu0 %v227
      %948 = vmatprep.subr.mxu0 0.0
      %949 = vmatpush1.msra.mxu0 %v226
      %950 = vmatprep.subr.mxu0 0.0
      %951 = vmatpush1.msra.mxu0 %v225
      %952 = vmatprep.subr.mxu0 0.0
      %953 = vmatpush1.msra.mxu0 %v224
      %954 = vmatprep.subr.mxu0 0.0
      %955 = vmatpush1.msra.mxu0 %v223
      %956 = vmatprep.subr.mxu0 0.0
      %957 = vmatpush1.msra.mxu0 %v222
      %958 = vmatprep.subr.mxu0 0.0
      %959 = vmatpush1.msra.mxu0 %v221
      %960 = vmatprep.subr.mxu0 0.0
      %961 = vmatpush1.msra.mxu0 %v220
      %962 = vmatprep.subr.mxu0 0.0
      %963 = vmatpush1.msra.mxu0 %v219
      %964 = vmatprep.subr.mxu0 0.0
      %965 = vmatpush1.msra.mxu0 %v218
      %966 = vmatprep.subr.mxu0 0.0
      %967 = vmatpush1.msra.mxu0 %v217
      %968 = vmatprep.subr.mxu0 0.0
      %969 = vmatpush1.msra.mxu0 %v216
      %970 = vmatprep.subr.mxu0 0.0
      %971 = vmatpush2.msra.mxu0 0.0
      %972 = vmatprep.subr.mxu0 0.0
      %973 = vmatpush2.msra.mxu0 0.0
      %974 = vmatprep.subr.mxu0 0.0
      %975 = vmatpush2.msra.mxu0 0.0
      %976 = vmatprep.subr.mxu0 0.0
      %977 = vmatpush2.msra.mxu0 0.0
      %978 = vmatprep.subr.mxu0 0.0
      %979 = vmatpush2.msra.mxu0 0.0
      %980 = vmatprep.subr.mxu0 0.0
      %981 = vmatpush2.msra.mxu0 0.0
      %982 = vmatprep.subr.mxu0 0.0
      %983 = vmatpush2.msra.mxu0 0.0
      %984 = vmatprep.subr.mxu0 0.0
      %985 = vmatpush2.msra.mxu0 0.0
      %986 = vmatprep.subr.mxu0 0.0
      %987 = vmatpush2.msra.mxu0 0.0
      %988 = vmatprep.subr.mxu0 0.0
      %989 = vmatpush2.msra.mxu0 0.0
      %990 = vmatprep.subr.mxu0 0.0
      %991 = vmatpush2.msra.mxu0 0.0
      %992 = vmatprep.subr.mxu0 0.0
      %993 = vmatpush2.msra.mxu0 0.0
      %994 = vmatprep.subr.mxu0 0.0
      %995 = vmatpush2.msra.mxu0 0.0
      %996 = vmatprep.subr.mxu0 0.0
      %997 = vmatpush2.msra.mxu0 0.0
      %998 = vmatprep.subr.mxu0 0.0
      %999 = vmatpush2.msra.mxu0 0.0
      %1000 = vmatprep.subr.mxu0 0.0
      %1001 = vmatpush2.msra.mxu0 0.0
      %1002 = vmatprep.mubr.f32.mxu0 0.0
      %1003 = vmatmul.mubr.f32.gmra.mxu0 %v847
      %v1004 = vpop.f32.mrf.mxu0
      %v1005 = vadd.f32 0.0, %v1004
      %v1006 = vpop.f32.mrf.mxu0
      %1007 = vmatprep.mubr.f32.mxu0 0.0
      %1008 = vmatmul.mubr.f32.gmra.mxu0 %v848
      %v1009 = vpop.f32.mrf.mxu0
      %v1010 = vadd.f32 0.0, %v1009
      %v1011 = vpop.f32.mrf.mxu0
      %1012 = vdwg.mxu0
      %v1013 = vadd.f32 %v518, %v1005
      %v1014 = vadd.f32 %v523, %v1010
      %v1015 = vtanh.pop %v1013
      %v1016 = vtanh.pop %v1014
      %v1017 = vsub.f32 1.0, %v935
      %v1018 = vsub.f32 1.0, %v937
      %v1019 = vmul.f32 %v1017, %v843
      %v1020 = vmul.f32 %v1018, %v844
      %v1021 = vmul.f32 %v935, %v1015
      %v1022 = vmul.f32 %v937, %v1016
      %v1023 = vadd.f32 %v1019, %v1021
      %v1024 = vadd.f32 %v1020, %v1022
    $region102: #{tpu_custom_call.1} parent=1 // loop_footer
      %s531 = sadd.s32 1, %s527
    $region103: #{tpu_custom_call.1} parent=1 // loop_footer_branch
      %526 = sbr.rel target = $region99
    $region104: #{tpu_custom_call.1} parent=1 // loop_exit
      _
    %vm1025 = vcmask 130048
    %v1027 = vsel %vm1025, %v183, 0
    %1029 = vmatprep.subr.mxu0 0.0
    %1030 = vmatpush1.msra.mxu0 0.0
    %1031 = vmatprep.subr.mxu0 0.0
    %1032 = vmatpush1.msra.mxu0 0.0
    %1033 = vmatprep.subr.mxu0 0.0
    %1034 = vmatpush1.msra.mxu0 0.0
    %1035 = vmatprep.subr.mxu0 0.0
    %1036 = vmatpush1.msra.mxu0 0.0
    %1037 = vmatprep.subr.mxu0 0.0
    %1038 = vmatpush1.msra.mxu0 0.0
    %1039 = vmatprep.subr.mxu0 0.0
    %1040 = vmatpush1.msra.mxu0 0.0
    %1041 = vmatprep.subr.mxu0 0.0
    %1042 = vmatpush1.msra.mxu0 0.0
    %1043 = vmatprep.subr.mxu0 0.0
    %1044 = vmatpush1.msra.mxu0 0.0
    %1045 = vmatprep.subr.mxu0 0.0
    %1046 = vmatpush1.msra.mxu0 0.0
    %1047 = vmatprep.subr.mxu0 0.0
    %1048 = vmatpush1.msra.mxu0 0.0
    %1049 = vmatprep.subr.mxu0 0.0
    %1050 = vmatpush1.msra.mxu0 0.0
    %1051 = vmatprep.subr.mxu0 0.0
    %1052 = vmatpush1.msra.mxu0 0.0
    %1053 = vmatprep.subr.mxu0 0.0
    %1054 = vmatpush1.msra.mxu0 0.0
    %1055 = vmatprep.subr.mxu0 0.0
    %1056 = vmatpush1.msra.mxu0 0.0
    %1057 = vmatprep.subr.mxu0 0.0
    %1058 = vmatpush1.msra.mxu0 %v533
    %1059 = vmatprep.subr.mxu0 0.0
    %1060 = vmatpush1.msra.mxu0 %v532
    %1061 = vmatprep.subr.mxu0 0.0
    %1062 = vmatpush2.msra.mxu0 0.0
    %1063 = vmatprep.subr.mxu0 0.0
    %1064 = vmatpush2.msra.mxu0 0.0
    %1065 = vmatprep.subr.mxu0 0.0
    %1066 = vmatpush2.msra.mxu0 0.0
    %1067 = vmatprep.subr.mxu0 0.0
    %1068 = vmatpush2.msra.mxu0 0.0
    %1069 = vmatprep.subr.mxu0 0.0
    %1070 = vmatpush2.msra.mxu0 0.0
    %1071 = vmatprep.subr.mxu0 0.0
    %1072 = vmatpush2.msra.mxu0 0.0
    %1073 = vmatprep.subr.mxu0 0.0
    %1074 = vmatpush2.msra.mxu0 0.0
    %1075 = vmatprep.subr.mxu0 0.0
    %1076 = vmatpush2.msra.mxu0 0.0
    %1077 = vmatprep.subr.mxu0 0.0
    %1078 = vmatpush2.msra.mxu0 0.0
    %1079 = vmatprep.subr.mxu0 0.0
    %1080 = vmatpush2.msra.mxu0 0.0
    %1081 = vmatprep.subr.mxu0 0.0
    %1082 = vmatpush2.msra.mxu0 0.0
    %1083 = vmatprep.subr.mxu0 0.0
    %1084 = vmatpush2.msra.mxu0 0.0
    %1085 = vmatprep.subr.mxu0 0.0
    %1086 = vmatpush2.msra.mxu0 0.0
    %1087 = vmatprep.subr.mxu0 0.0
    %1088 = vmatpush2.msra.mxu0 0.0
    %1089 = vmatprep.subr.mxu0 0.0
    %1090 = vmatpush2.msra.mxu0 0.0
    %1091 = vmatprep.subr.mxu0 0.0
    %1092 = vmatpush2.msra.mxu0 0.0
    %1093 = vmatprep.mubr.f32.mxu0 0.0
    %1094 = vmatmul.mubr.f32.gmra.mxu0 %v1027
    %v1095 = vpop.f32.mrf.mxu0
    %v1096 = vadd.f32 0.0, %v1095
    %v1097 = vpop.f32.mrf.mxu0
    %1098 = vdwg.mxu0
    %v1099 = vld [vmem:[#allocation13] sm:$0xff]
    %v1100 = vld [vmem:[#allocation13 + $0x8] sm:$0xff]
    %v1101 = vld [vmem:[#allocation13 + $0x10] sm:$0xff]
    %v1102 = vld [vmem:[#allocation13 + $0x18] sm:$0xff]
    %v1103 = vld [vmem:[#allocation13 + $0x20] sm:$0xff]
    %v1104 = vld [vmem:[#allocation13 + $0x28] sm:$0xff]
    %v1105 = vld [vmem:[#allocation13 + $0x30] sm:$0xff]
    %v1106 = vld [vmem:[#allocation13 + $0x38] sm:$0xff]
    %v1107 = vld [vmem:[#allocation13 + $0x40] sm:$0xff]
    %v1108 = vld [vmem:[#allocation13 + $0x48] sm:$0xff]
    %v1109 = vld [vmem:[#allocation13 + $0x50] sm:$0xff]
    %v1110 = vld [vmem:[#allocation13 + $0x58] sm:$0xff]
    %v1111 = vld [vmem:[#allocation13 + $0x60] sm:$0xff]
    %v1112 = vld [vmem:[#allocation13 + $0x68] sm:$0xff]
    %v1113 = vld [vmem:[#allocation13 + $0x70] sm:$0xff]
    %v1114 = vld [vmem:[#allocation13 + $0x78] sm:$0xff]
    %v1115 = vld [vmem:[#allocation14] sm:$0xff]
    %v1116 = vld [vmem:[#allocation14 + $0x8] sm:$0xff]
    %v1117 = vld [vmem:[#allocation14 + $0x10] sm:$0xff]
    %v1118 = vld [vmem:[#allocation14 + $0x18] sm:$0xff]
    %v1119 = vld [vmem:[#allocation14 + $0x20] sm:$0xff]
    %v1120 = vld [vmem:[#allocation14 + $0x28] sm:$0xff]
    %v1121 = vld [vmem:[#allocation14 + $0x30] sm:$0xff]
    %v1122 = vld [vmem:[#allocation14 + $0x38] sm:$0xff]
    %v1123 = vld [vmem:[#allocation14 + $0x40] sm:$0xff]
    %v1124 = vld [vmem:[#allocation14 + $0x48] sm:$0xff]
    %v1125 = vld [vmem:[#allocation14 + $0x50] sm:$0xff]
    %v1126 = vld [vmem:[#allocation14 + $0x58] sm:$0xff]
    %v1127 = vld [vmem:[#allocation14 + $0x60] sm:$0xff]
    %v1128 = vld [vmem:[#allocation14 + $0x68] sm:$0xff]
    %v1129 = vld [vmem:[#allocation14 + $0x70] sm:$0xff]
    %v1130 = vld [vmem:[#allocation14 + $0x78] sm:$0xff]
    %1131 = vmatprep.subr.mxu0 0.0
    %1132 = vmatpush1.msra.mxu0 %v1130
    %1133 = vmatprep.subr.mxu0 0.0
    %1134 = vmatpush1.msra.mxu0 %v1129
    %1135 = vmatprep.subr.mxu0 0.0
    %1136 = vmatpush1.msra.mxu0 %v1128
    %1137 = vmatprep.subr.mxu0 0.0
    %1138 = vmatpush1.msra.mxu0 %v1127
    %1139 = vmatprep.subr.mxu0 0.0
    %1140 = vmatpush1.msra.mxu0 %v1126
    %1141 = vmatprep.subr.mxu0 0.0
    %1142 = vmatpush1.msra.mxu0 %v1125
    %1143 = vmatprep.subr.mxu0 0.0
    %1144 = vmatpush1.msra.mxu0 %v1124
    %1145 = vmatprep.subr.mxu0 0.0
    %1146 = vmatpush1.msra.mxu0 %v1123
    %1147 = vmatprep.subr.mxu0 0.0
    %1148 = vmatpush1.msra.mxu0 %v1122
    %1149 = vmatprep.subr.mxu0 0.0
    %1150 = vmatpush1.msra.mxu0 %v1121
    %1151 = vmatprep.subr.mxu0 0.0
    %1152 = vmatpush1.msra.mxu0 %v1120
    %1153 = vmatprep.subr.mxu0 0.0
    %1154 = vmatpush1.msra.mxu0 %v1119
    %1155 = vmatprep.subr.mxu0 0.0
    %1156 = vmatpush1.msra.mxu0 %v1118
    %1157 = vmatprep.subr.mxu0 0.0
    %1158 = vmatpush1.msra.mxu0 %v1117
    %1159 = vmatprep.subr.mxu0 0.0
    %1160 = vmatpush1.msra.mxu0 %v1116
    %1161 = vmatprep.subr.mxu0 0.0
    %1162 = vmatpush1.msra.mxu0 %v1115
    %1163 = vmatprep.subr.mxu0 0.0
    %1164 = vmatpush2.msra.mxu0 0.0
    %1165 = vmatprep.subr.mxu0 0.0
    %1166 = vmatpush2.msra.mxu0 0.0
    %1167 = vmatprep.subr.mxu0 0.0
    %1168 = vmatpush2.msra.mxu0 0.0
    %1169 = vmatprep.subr.mxu0 0.0
    %1170 = vmatpush2.msra.mxu0 0.0
    %1171 = vmatprep.subr.mxu0 0.0
    %1172 = vmatpush2.msra.mxu0 0.0
    %1173 = vmatprep.subr.mxu0 0.0
    %1174 = vmatpush2.msra.mxu0 0.0
    %1175 = vmatprep.subr.mxu0 0.0
    %1176 = vmatpush2.msra.mxu0 0.0
    %1177 = vmatprep.subr.mxu0 0.0
    %1178 = vmatpush2.msra.mxu0 0.0
    %1179 = vmatprep.subr.mxu0 0.0
    %1180 = vmatpush2.msra.mxu0 0.0
    %1181 = vmatprep.subr.mxu0 0.0
    %1182 = vmatpush2.msra.mxu0 0.0
    %1183 = vmatprep.subr.mxu0 0.0
    %1184 = vmatpush2.msra.mxu0 0.0
    %1185 = vmatprep.subr.mxu0 0.0
    %1186 = vmatpush2.msra.mxu0 0.0
    %1187 = vmatprep.subr.mxu0 0.0
    %1188 = vmatpush2.msra.mxu0 0.0
    %1189 = vmatprep.subr.mxu0 0.0
    %1190 = vmatpush2.msra.mxu0 0.0
    %1191 = vmatprep.subr.mxu0 0.0
    %1192 = vmatpush2.msra.mxu0 0.0
    %1193 = vmatprep.subr.mxu0 0.0
    %1194 = vmatpush2.msra.mxu0 0.0
    %1195 = vmatprep.mubr.f32.mxu0 0.0
    %1196 = vmatmul.mubr.f32.gmra.mxu0 %v1096
    %v1197 = vpop.f32.mrf.mxu0
    %v1198 = vadd.f32 0.0, %v1197
    %v1199 = vpop.f32.mrf.mxu0
    %1200 = vdwg.mxu0
    %1201 = vmatprep.subr.mxu0 0.0
    %1202 = vmatpush1.msra.mxu0 %v1114
    %1203 = vmatprep.subr.mxu0 0.0
    %1204 = vmatpush1.msra.mxu0 %v1113
    %1205 = vmatprep.subr.mxu0 0.0
    %1206 = vmatpush1.msra.mxu0 %v1112
    %1207 = vmatprep.subr.mxu0 0.0
    %1208 = vmatpush1.msra.mxu0 %v1111
    %1209 = vmatprep.subr.mxu0 0.0
    %1210 = vmatpush1.msra.mxu0 %v1110
    %1211 = vmatprep.subr.mxu0 0.0
    %1212 = vmatpush1.msra.mxu0 %v1109
    %1213 = vmatprep.subr.mxu0 0.0
    %1214 = vmatpush1.msra.mxu0 %v1108
    %1215 = vmatprep.subr.mxu0 0.0
    %1216 = vmatpush1.msra.mxu0 %v1107
    %1217 = vmatprep.subr.mxu0 0.0
    %1218 = vmatpush1.msra.mxu0 %v1106
    %1219 = vmatprep.subr.mxu0 0.0
    %1220 = vmatpush1.msra.mxu0 %v1105
    %1221 = vmatprep.subr.mxu0 0.0
    %1222 = vmatpush1.msra.mxu0 %v1104
    %1223 = vmatprep.subr.mxu0 0.0
    %1224 = vmatpush1.msra.mxu0 %v1103
    %1225 = vmatprep.subr.mxu0 0.0
    %1226 = vmatpush1.msra.mxu0 %v1102
    %1227 = vmatprep.subr.mxu0 0.0
    %1228 = vmatpush1.msra.mxu0 %v1101
    %1229 = vmatprep.subr.mxu0 0.0
    %1230 = vmatpush1.msra.mxu0 %v1100
    %1231 = vmatprep.subr.mxu0 0.0
    %1232 = vmatpush1.msra.mxu0 %v1099
    %1233 = vmatprep.subr.mxu0 0.0
    %1234 = vmatpush2.msra.mxu0 0.0
    %1235 = vmatprep.subr.mxu0 0.0
    %1236 = vmatpush2.msra.mxu0 0.0
    %1237 = vmatprep.subr.mxu0 0.0
    %1238 = vmatpush2.msra.mxu0 0.0
    %1239 = vmatprep.subr.mxu0 0.0
    %1240 = vmatpush2.msra.mxu0 0.0
    %1241 = vmatprep.subr.mxu0 0.0
    %1242 = vmatpush2.msra.mxu0 0.0
    %1243 = vmatprep.subr.mxu0 0.0
    %1244 = vmatpush2.msra.mxu0 0.0
    %1245 = vmatprep.subr.mxu0 0.0
    %1246 = vmatpush2.msra.mxu0 0.0
    %1247 = vmatprep.subr.mxu0 0.0
    %1248 = vmatpush2.msra.mxu0 0.0
    %1249 = vmatprep.subr.mxu0 0.0
    %1250 = vmatpush2.msra.mxu0 0.0
    %1251 = vmatprep.subr.mxu0 0.0
    %1252 = vmatpush2.msra.mxu0 0.0
    %1253 = vmatprep.subr.mxu0 0.0
    %1254 = vmatpush2.msra.mxu0 0.0
    %1255 = vmatprep.subr.mxu0 0.0
    %1256 = vmatpush2.msra.mxu0 0.0
    %1257 = vmatprep.subr.mxu0 0.0
    %1258 = vmatpush2.msra.mxu0 0.0
    %1259 = vmatprep.subr.mxu0 0.0
    %1260 = vmatpush2.msra.mxu0 0.0
    %1261 = vmatprep.subr.mxu0 0.0
    %1262 = vmatpush2.msra.mxu0 0.0
    %1263 = vmatprep.subr.mxu0 0.0
    %1264 = vmatpush2.msra.mxu0 0.0
    %1265 = vmatprep.mubr.f32.mxu0 0.0
    %1266 = vmatmul.mubr.f32.gmra.mxu0 %v165
    %v1267 = vpop.f32.mrf.mxu0
    %v1268 = vadd.f32 %v1198, %v1267
    %v1269 = vpop.f32.mrf.mxu0
    %1270 = vdwg.mxu0
    %v1271 = vld [vmem:[%s15] sm:$0x1]
    %v1273 = vlaneseq
    %v1274 = vshrl.u32 %v1273, 7
    %v1275 = vsub.s32 0, %v1274
    %v1276 = vrot.slane %v1271, %v1275
    %v1278 = vadd.f32 %v1268, %v1276
    %v1279 = vmax.f32 %v1278, 0.0
    %1280 = vst [vmem:[#allocation16] sm:$0xff] %v1279
    // Predicated region
    $region105: #{tpu_custom_call.1} parent=1 // pred_check
      _
    $region106: #{tpu_custom_call.1} parent=1 // pred_check_branch
      %1282 = sbr.rel (0) target = $region108
    $region107: #{tpu_custom_call.1} parent=1 // pred_region
      %s1284 = ssub.s32 128, 128
      %1285 = vsyncadd [#allocation4], %s1284
      %s1287 = sshll.u32 [#allocation16], 4
      %s1288 = int_to_ptr.vmem [resolvable:$true] %s1287
      %1290 = dma.vmem_to_hbm [thread:$0]  %s1288, 128, %s16, [#allocation4]
    $region108: #{tpu_custom_call.1} parent=1 // pred_fallthru
      _
    // Predicated region
    $region109: #{tpu_custom_call.1} parent=1 // pred_check
      _
    $region110: #{tpu_custom_call.1} parent=1 // pred_check_branch
      %1292 = sbr.rel (0) target = $region112
    $region111: #{tpu_custom_call.1} parent=1 // pred_region
      %1293 = dma.done [#allocation4], 128
    $region112: #{tpu_custom_call.1} parent=1 // pred_fallthru
      _
    %1294 = vsyncpa [#allocation3], 1
    %1295 = vsyncpa [#allocation6], 1
    %1296 = vsyncpa [#allocation9], 1
    %1297 = vsyncpa [#allocation12], 1
    %1298 = vsyncpa [#allocation15], 1
    %1299 = vsyncpa [#allocation4], 1

</llo_original>
